<compile_context>
chip_gen: v7x
topology: tpu7x:2x2x1
jax: 0.10.0
libtpu: 0.0.40
codegen_flags: <defaults>
</compile_context>

<pallas_src>
import functools

import jax
import jax.numpy as jnp
from jax.experimental import pallas as pl
from jax.experimental.pallas import tpu as pltpu

LANE = 128
SUBLANE = 8


def _round_up(n, m):
    return -(-n // m) * m


def _pad2(a, rows, cols):
    return jnp.pad(a, ((0, rows - a.shape[0]), (0, cols - a.shape[1])))


# ----------------------------------------------------------------------------
# Kernel
# ----------------------------------------------------------------------------
def _cursor_rnn_kernel(x_ref, wih0_ref, wihr_ref, whh_ref, b_ref, wfc_ref,
                       bfc_ref, out_ref, *, num_layers):
    # x_ref   : (T, Bp, Dp)             time-major, sublane/lane-padded input
    # wih0_ref: (Dp, Hp)                layer-0 W_ih^T
    # wihr_ref: (max(L-1,1), Hp, Hp)    W_ih^T for layers 1..L-1
    # whh_ref : (L, Hp, Hp)             W_hh^T per layer
    # b_ref   : (L, 1, Hp)              pre-summed b_ih + b_hh
    # wfc_ref : (Hp, Op)                fc weight, pre-transposed
    # bfc_ref : (1, Op)
    # out_ref : (Bp, Op)
    T, Bp, Dp = x_ref.shape

    # Layer-0 input flattened to (T*Bp, Dp); Bp % 8 == 0 so the merge of the
    # leading dims is tile-aligned (no relayout / data movement).
    seq = x_ref[...].reshape(T * Bp, Dp)

    h = None
    for l in range(num_layers):                       # short static loop
        w_in = wih0_ref[...] if l == 0 else wihr_ref[l - 1]

        # One big MXU op covers the input->hidden projection (+bias) for all
        # T timesteps of this layer.
        pre = (jnp.dot(seq, w_in, preferred_element_type=jnp.float32)
               + b_ref[l])                            # (T*Bp, Hp)

        w_hh = whh_ref[l]
        h = jnp.zeros((Bp, pre.shape[-1]), jnp.float32)
        outs = []
        # TODO(synk): for very long T, switch to a fori_loop writing into a
        # VMEM scratch sequence buffer to bound unrolled code size.
        for t in range(T):                            # static unroll (T small)
            h = jnp.tanh(
                pre[t * Bp:(t + 1) * Bp, :]
                + jnp.dot(h, w_hh, preferred_element_type=jnp.float32))
            outs.append(h)

        if l + 1 < num_layers:
            seq = jnp.concatenate(outs, axis=0)       # (T*Bp, Hp) next input

    out_ref[...] = (
        jnp.dot(h, wfc_ref[...], preferred_element_type=jnp.float32)
        + bfc_ref[...]).astype(out_ref.dtype)


# ----------------------------------------------------------------------------
# Parameter packing (transpose + pre-sum biases + lane padding)
# ----------------------------------------------------------------------------
def pack_params(params, *, num_layers, lane=LANE):
    D = params["w_ih0"].shape[1]
    H = params["w_hh"].shape[-1]
    O = params["w_fc"].shape[0]
    Dp, Hp, Op = _round_up(D, lane), _round_up(H, lane), _round_up(O, lane)

    w_ih0 = _pad2(params["w_ih0"].T, Dp, Hp)                    # (Dp, Hp)

    rest = [_pad2(params["w_ih_rest"][l - 1].T, Hp, Hp)
            for l in range(1, num_layers)]
    if not rest:  # keep kernel arity fixed when num_layers == 1
        rest.append(jnp.zeros((Hp, Hp), jnp.float32))
    w_ihr = jnp.stack(rest, axis=0)                             # (L-1|1, Hp, Hp)

    w_hh = jnp.stack([_pad2(params["w_hh"][l].T, Hp, Hp)
                      for l in range(num_layers)], axis=0)      # (L, Hp, Hp)

    b = params["b_ih"] + params["b_hh"]                         # pre-summed
    b = jnp.pad(b, ((0, 0), (0, Hp - H)))[:, None, :]           # (L, 1, Hp)

    w_fc_t = _pad2(params["w_fc"].T, Hp, Op)                    # (Hp, Op)
    b_fc = jnp.pad(params["b_fc"], (0, Op - O))[None, :]        # (1, Op)

    return w_ih0, w_ihr, w_hh, b, w_fc_t, b_fc


# ----------------------------------------------------------------------------
# Wrapper
# ----------------------------------------------------------------------------
def cursor_rnn_forward(x, params, *, num_layers, lane=LANE):
    """x: (B, T, D_in) float32.  Returns (B, output_dim) float32."""
    B, T, D = x.shape
    H = params["w_hh"].shape[-1]
    O = params["w_fc"].shape[0]
    Dp, Hp, Op = _round_up(D, lane), _round_up(H, lane), _round_up(O, lane)
    Bp = _round_up(B, SUBLANE)  # sublane-align batch -> tile-aligned reshapes

    w_ih0, w_ihr, w_hh, b, w_fc_t, b_fc = pack_params(
        params, num_layers=num_layers, lane=lane)

    # time-major, batch/lane-padded input (T, Bp, Dp)
    xt = jnp.pad(jnp.transpose(x, (1, 0, 2)),
                 ((0, 0), (0, Bp - B), (0, Dp - D)))

    # Batch grid: single tile at toy sizes; shards across cores as B grows.
    b_tile = 256 if Bp % 256 == 0 else Bp
    grid = (Bp // b_tile,)
    n_rest = max(num_layers - 1, 1)

    kernel = functools.partial(_cursor_rnn_kernel, num_layers=num_layers)

    # TODO(synk): for large H / num_layers / T, block the per-layer weights and
    # the sequence buffer via BlockSpec and set vmem_limit_bytes to stay within
    # v7x's 64 MiB VMEM.
    out = pl.pallas_call(
        kernel,
        out_shape=jax.ShapeDtypeStruct((Bp, Op), jnp.float32),
        grid=grid,
        in_specs=[
            pl.BlockSpec((T, b_tile, Dp), lambda i: (0, i, 0)),
            pl.BlockSpec((Dp, Hp), lambda i: (0, 0)),
            pl.BlockSpec((n_rest, Hp, Hp), lambda i: (0, 0, 0)),
            pl.BlockSpec((num_layers, Hp, Hp), lambda i: (0, 0, 0)),
            pl.BlockSpec((num_layers, 1, Hp), lambda i: (0, 0, 0)),
            pl.BlockSpec((Hp, Op), lambda i: (0, 0)),
            pl.BlockSpec((1, Op), lambda i: (0, 0)),
        ],
        out_specs=pl.BlockSpec((b_tile, Op), lambda i: (i, 0)),
        compiler_params=pltpu.CompilerParams(
            dimension_semantics=("parallel",)),
    )(xt, w_ih0, w_ihr, w_hh, b, w_fc_t, b_fc)

    return out[:B, :O]


# ----------------------------------------------------------------------------
# Deterministic PyTorch-style init (nn.RNN / nn.Linear reset_parameters)
# ----------------------------------------------------------------------------
def make_params(key, input_dim, hidden_dim, output_dim, num_layers):
    ks = jax.random.split(key, 7)
    bound = 1.0 / float(hidden_dim) ** 0.5

    def u(k, shape):
        return jax.random.uniform(k, shape, jnp.float32, -bound, bound)

    n_rest = max(num_layers - 1, 1)
    return {
        "w_ih0": u(ks[0], (hidden_dim, input_dim)),            # (H, D)
        "w_ih_rest": u(ks[1], (n_rest, hidden_dim, hidden_dim)),
        "w_hh": u(ks[2], (num_layers, hidden_dim, hidden_dim)),
        "b_ih": u(ks[3], (num_layers, hidden_dim)),
        "b_hh": u(ks[4], (num_layers, hidden_dim)),
        "w_fc": u(ks[5], (output_dim, hidden_dim)),            # (O, H)
        "b_fc": u(ks[6], (output_dim,)),
    }


def reference_forward(x, params, *, num_layers):
    """Pure-JAX reference of the PyTorch forward (for verification)."""
    B, T, _ = x.shape
    H = params["w_hh"].shape[-1]
    seq = x
    for l in range(num_layers):
        w_ih = params["w_ih0"] if l == 0 else params["w_ih_rest"][l - 1]
        w_hh = params["w_hh"][l]
        bias = params["b_ih"][l] + params["b_hh"][l]
        h = jnp.zeros((B, H), jnp.float32)
        outs = []
        for t in range(T):
            h = jnp.tanh(seq[:, t, :] @ w_ih.T + h @ w_hh.T + bias)
            outs.append(h)
        seq = jnp.stack(outs, axis=1)
    return seq[:, -1, :] @ params["w_fc"].T + params["b_fc"]


if __name__ == "__main__":
    B, T = 2, 8
    input_dim, hidden_dim, output_dim, num_layers = 4, 32, 4, 2

    key = jax.random.PRNGKey(0)
    k_x, k_p = jax.random.split(key)
    x = jax.random.normal(k_x, (B, T, input_dim), jnp.float32)
    params = make_params(k_p, input_dim, hidden_dim, output_dim, num_layers)

    out = cursor_rnn_forward(x, params, num_layers=num_layers)
    out = jax.block_until_ready(out)

    ref = reference_forward(x, params, num_layers=num_layers)
    assert out.shape == (B, output_dim)
    assert jnp.allclose(out, ref, atol=1e-5, rtol=1e-5), "mismatch vs reference"

    print("KERNEL_OK")
</pallas_src>

<mosaic_0001>
module attributes {stable_mosaic.version = 11 : i64} {
  func.func @_cursor_rnn_kernel(%arg0: i32, %arg1: memref<8x8x128xf32, #tpu.memory_space<vmem>>, %arg2: memref<128x128xf32, #tpu.memory_space<vmem>>, %arg3: memref<1x128x128xf32, #tpu.memory_space<vmem>>, %arg4: memref<2x128x128xf32, #tpu.memory_space<vmem>>, %arg5: memref<2x1x128xf32, #tpu.memory_space<vmem>>, %arg6: memref<128x128xf32, #tpu.memory_space<vmem>>, %arg7: memref<1x128xf32, #tpu.memory_space<vmem>>, %arg8: memref<8x128xf32, #tpu.memory_space<vmem>>) attributes {dimension_semantics = [#tpu.dimension_semantics<parallel>], iteration_bounds = array<i64: 1>, scalar_prefetch = 0 : i64, scratch_operands = 0 : i64, tpu.core_type = #tpu.core_type<tc>, window_params = [{transform_indices = @transform_0, window_bounds = array<i64: 8, 8, 128>}, {pipeline_mode = #tpu.pipeline_mode<synchronous>, transform_indices = @transform_1, window_bounds = array<i64: 128, 128>}, {pipeline_mode = #tpu.pipeline_mode<synchronous>, transform_indices = @transform_2, window_bounds = array<i64: 1, 128, 128>}, {pipeline_mode = #tpu.pipeline_mode<synchronous>, transform_indices = @transform_3, window_bounds = array<i64: 2, 128, 128>}, {pipeline_mode = #tpu.pipeline_mode<synchronous>, transform_indices = @transform_4, window_bounds = array<i64: 2, 1, 128>}, {pipeline_mode = #tpu.pipeline_mode<synchronous>, transform_indices = @transform_5, window_bounds = array<i64: 128, 128>}, {pipeline_mode = #tpu.pipeline_mode<synchronous>, transform_indices = @transform_6, window_bounds = array<i64: 1, 128>}, {transform_indices = @transform_7, window_bounds = array<i64: 8, 128>}]} {
    %c0 = arith.constant 0 : index
    %c0_0 = arith.constant 0 : index
    %c0_1 = arith.constant 0 : index
    %0 = vector.load %arg1[%c0, %c0_0, %c0_1] : memref<8x8x128xf32, #tpu.memory_space<vmem>>, vector<8x8x128xf32>
    %1 = vector.shape_cast %0 : vector<8x8x128xf32> to vector<64x128xf32>
    %c0_2 = arith.constant 0 : index
    %c0_3 = arith.constant 0 : index
    %2 = vector.load %arg2[%c0_2, %c0_3] : memref<128x128xf32, #tpu.memory_space<vmem>>, vector<128x128xf32>
    %cst = arith.constant dense<0.000000e+00> : vector<64x128xf32>
    %3 = tpu.matmul %1, %2, %cst {dimension_numbers = #tpu.dot_dimension_numbers<[1], [0], [0], [1], [0, 0, 1, 1], [], []>} : vector<64x128xf32>, vector<128x128xf32>, vector<64x128xf32> -> vector<64x128xf32>
    %c0_4 = arith.constant 0 : index
    %c0_5 = arith.constant 0 : index
    %c0_6 = arith.constant 0 : index
    %4 = vector.load %arg5[%c0_4, %c0_5, %c0_6] : memref<2x1x128xf32, #tpu.memory_space<vmem>>, vector<1x1x128xf32>
    %5 = vector.shape_cast %4 : vector<1x1x128xf32> to vector<1x128xf32>
    %6 = vector.broadcast %5 : vector<1x128xf32> to vector<64x128xf32>
    %7 = arith.addf %3, %6 : vector<64x128xf32>
    %c0_7 = arith.constant 0 : index
    %c0_8 = arith.constant 0 : index
    %c0_9 = arith.constant 0 : index
    %8 = vector.load %arg4[%c0_7, %c0_8, %c0_9] : memref<2x128x128xf32, #tpu.memory_space<vmem>>, vector<1x128x128xf32>
    %9 = vector.shape_cast %8 : vector<1x128x128xf32> to vector<128x128xf32>
    %cst_10 = arith.constant 0.000000e+00 : f32
    %10 = vector.broadcast %cst_10 : f32 to vector<8x128xf32>
    %11 = vector.extract_strided_slice %7 {offsets = [0, 0], sizes = [8, 128], strides = [1, 1]} : vector<64x128xf32> to vector<8x128xf32>
    %cst_11 = arith.constant dense<0.000000e+00> : vector<8x128xf32>
    %12 = tpu.matmul %10, %9, %cst_11 {dimension_numbers = #tpu.dot_dimension_numbers<[1], [0], [0], [1], [0, 0, 1, 1], [], []>} : vector<8x128xf32>, vector<128x128xf32>, vector<8x128xf32> -> vector<8x128xf32>
    %13 = arith.addf %11, %12 : vector<8x128xf32>
    %14 = math.tanh %13 : vector<8x128xf32>
    %15 = vector.extract_strided_slice %7 {offsets = [8, 0], sizes = [8, 128], strides = [1, 1]} : vector<64x128xf32> to vector<8x128xf32>
    %cst_12 = arith.constant dense<0.000000e+00> : vector<8x128xf32>
    %16 = tpu.matmul %14, %9, %cst_12 {dimension_numbers = #tpu.dot_dimension_numbers<[1], [0], [0], [1], [0, 0, 1, 1], [], []>} : vector<8x128xf32>, vector<128x128xf32>, vector<8x128xf32> -> vector<8x128xf32>
    %17 = arith.addf %15, %16 : vector<8x128xf32>
    %18 = math.tanh %17 : vector<8x128xf32>
    %19 = vector.extract_strided_slice %7 {offsets = [16, 0], sizes = [8, 128], strides = [1, 1]} : vector<64x128xf32> to vector<8x128xf32>
    %cst_13 = arith.constant dense<0.000000e+00> : vector<8x128xf32>
    %20 = tpu.matmul %18, %9, %cst_13 {dimension_numbers = #tpu.dot_dimension_numbers<[1], [0], [0], [1], [0, 0, 1, 1], [], []>} : vector<8x128xf32>, vector<128x128xf32>, vector<8x128xf32> -> vector<8x128xf32>
    %21 = arith.addf %19, %20 : vector<8x128xf32>
    %22 = math.tanh %21 : vector<8x128xf32>
    %23 = vector.extract_strided_slice %7 {offsets = [24, 0], sizes = [8, 128], strides = [1, 1]} : vector<64x128xf32> to vector<8x128xf32>
    %cst_14 = arith.constant dense<0.000000e+00> : vector<8x128xf32>
    %24 = tpu.matmul %22, %9, %cst_14 {dimension_numbers = #tpu.dot_dimension_numbers<[1], [0], [0], [1], [0, 0, 1, 1], [], []>} : vector<8x128xf32>, vector<128x128xf32>, vector<8x128xf32> -> vector<8x128xf32>
    %25 = arith.addf %23, %24 : vector<8x128xf32>
    %26 = math.tanh %25 : vector<8x128xf32>
    %27 = vector.extract_strided_slice %7 {offsets = [32, 0], sizes = [8, 128], strides = [1, 1]} : vector<64x128xf32> to vector<8x128xf32>
    %cst_15 = arith.constant dense<0.000000e+00> : vector<8x128xf32>
    %28 = tpu.matmul %26, %9, %cst_15 {dimension_numbers = #tpu.dot_dimension_numbers<[1], [0], [0], [1], [0, 0, 1, 1], [], []>} : vector<8x128xf32>, vector<128x128xf32>, vector<8x128xf32> -> vector<8x128xf32>
    %29 = arith.addf %27, %28 : vector<8x128xf32>
    %30 = math.tanh %29 : vector<8x128xf32>
    %31 = vector.extract_strided_slice %7 {offsets = [40, 0], sizes = [8, 128], strides = [1, 1]} : vector<64x128xf32> to vector<8x128xf32>
    %cst_16 = arith.constant dense<0.000000e+00> : vector<8x128xf32>
    %32 = tpu.matmul %30, %9, %cst_16 {dimension_numbers = #tpu.dot_dimension_numbers<[1], [0], [0], [1], [0, 0, 1, 1], [], []>} : vector<8x128xf32>, vector<128x128xf32>, vector<8x128xf32> -> vector<8x128xf32>
    %33 = arith.addf %31, %32 : vector<8x128xf32>
    %34 = math.tanh %33 : vector<8x128xf32>
    %35 = vector.extract_strided_slice %7 {offsets = [48, 0], sizes = [8, 128], strides = [1, 1]} : vector<64x128xf32> to vector<8x128xf32>
    %cst_17 = arith.constant dense<0.000000e+00> : vector<8x128xf32>
    %36 = tpu.matmul %34, %9, %cst_17 {dimension_numbers = #tpu.dot_dimension_numbers<[1], [0], [0], [1], [0, 0, 1, 1], [], []>} : vector<8x128xf32>, vector<128x128xf32>, vector<8x128xf32> -> vector<8x128xf32>
    %37 = arith.addf %35, %36 : vector<8x128xf32>
    %38 = math.tanh %37 : vector<8x128xf32>
    %39 = vector.extract_strided_slice %7 {offsets = [56, 0], sizes = [8, 128], strides = [1, 1]} : vector<64x128xf32> to vector<8x128xf32>
    %cst_18 = arith.constant dense<0.000000e+00> : vector<8x128xf32>
    %40 = tpu.matmul %38, %9, %cst_18 {dimension_numbers = #tpu.dot_dimension_numbers<[1], [0], [0], [1], [0, 0, 1, 1], [], []>} : vector<8x128xf32>, vector<128x128xf32>, vector<8x128xf32> -> vector<8x128xf32>
    %41 = arith.addf %39, %40 : vector<8x128xf32>
    %42 = math.tanh %41 : vector<8x128xf32>
    %43 = tpu.concatenate %14, %18, %22, %26, %30, %34, %38, %42 in 0 : vector<8x128xf32>, vector<8x128xf32>, vector<8x128xf32>, vector<8x128xf32>, vector<8x128xf32>, vector<8x128xf32>, vector<8x128xf32>, vector<8x128xf32> -> vector<64x128xf32>
    %c0_19 = arith.constant 0 : index
    %c0_20 = arith.constant 0 : index
    %c0_21 = arith.constant 0 : index
    %44 = vector.load %arg3[%c0_19, %c0_20, %c0_21] : memref<1x128x128xf32, #tpu.memory_space<vmem>>, vector<1x128x128xf32>
    %45 = vector.shape_cast %44 : vector<1x128x128xf32> to vector<128x128xf32>
    %cst_22 = arith.constant dense<0.000000e+00> : vector<64x128xf32>
    %46 = tpu.matmul %43, %45, %cst_22 {dimension_numbers = #tpu.dot_dimension_numbers<[1], [0], [0], [1], [0, 0, 1, 1], [], []>} : vector<64x128xf32>, vector<128x128xf32>, vector<64x128xf32> -> vector<64x128xf32>
    %c1 = arith.constant 1 : index
    %c0_23 = arith.constant 0 : index
    %c0_24 = arith.constant 0 : index
    %47 = vector.load %arg5[%c1, %c0_23, %c0_24] : memref<2x1x128xf32, #tpu.memory_space<vmem>>, vector<1x1x128xf32>
    %48 = vector.shape_cast %47 : vector<1x1x128xf32> to vector<1x128xf32>
    %49 = vector.broadcast %48 : vector<1x128xf32> to vector<64x128xf32>
    %50 = arith.addf %46, %49 : vector<64x128xf32>
    %c1_25 = arith.constant 1 : index
    %c0_26 = arith.constant 0 : index
    %c0_27 = arith.constant 0 : index
    %51 = vector.load %arg4[%c1_25, %c0_26, %c0_27] : memref<2x128x128xf32, #tpu.memory_space<vmem>>, vector<1x128x128xf32>
    %52 = vector.shape_cast %51 : vector<1x128x128xf32> to vector<128x128xf32>
    %cst_28 = arith.constant 0.000000e+00 : f32
    %53 = vector.broadcast %cst_28 : f32 to vector<8x128xf32>
    %54 = vector.extract_strided_slice %50 {offsets = [0, 0], sizes = [8, 128], strides = [1, 1]} : vector<64x128xf32> to vector<8x128xf32>
    %cst_29 = arith.constant dense<0.000000e+00> : vector<8x128xf32>
    %55 = tpu.matmul %53, %52, %cst_29 {dimension_numbers = #tpu.dot_dimension_numbers<[1], [0], [0], [1], [0, 0, 1, 1], [], []>} : vector<8x128xf32>, vector<128x128xf32>, vector<8x128xf32> -> vector<8x128xf32>
    %56 = arith.addf %54, %55 : vector<8x128xf32>
    %57 = math.tanh %56 : vector<8x128xf32>
    %58 = vector.extract_strided_slice %50 {offsets = [8, 0], sizes = [8, 128], strides = [1, 1]} : vector<64x128xf32> to vector<8x128xf32>
    %cst_30 = arith.constant dense<0.000000e+00> : vector<8x128xf32>
    %59 = tpu.matmul %57, %52, %cst_30 {dimension_numbers = #tpu.dot_dimension_numbers<[1], [0], [0], [1], [0, 0, 1, 1], [], []>} : vector<8x128xf32>, vector<128x128xf32>, vector<8x128xf32> -> vector<8x128xf32>
    %60 = arith.addf %58, %59 : vector<8x128xf32>
    %61 = math.tanh %60 : vector<8x128xf32>
    %62 = vector.extract_strided_slice %50 {offsets = [16, 0], sizes = [8, 128], strides = [1, 1]} : vector<64x128xf32> to vector<8x128xf32>
    %cst_31 = arith.constant dense<0.000000e+00> : vector<8x128xf32>
    %63 = tpu.matmul %61, %52, %cst_31 {dimension_numbers = #tpu.dot_dimension_numbers<[1], [0], [0], [1], [0, 0, 1, 1], [], []>} : vector<8x128xf32>, vector<128x128xf32>, vector<8x128xf32> -> vector<8x128xf32>
    %64 = arith.addf %62, %63 : vector<8x128xf32>
    %65 = math.tanh %64 : vector<8x128xf32>
    %66 = vector.extract_strided_slice %50 {offsets = [24, 0], sizes = [8, 128], strides = [1, 1]} : vector<64x128xf32> to vector<8x128xf32>
    %cst_32 = arith.constant dense<0.000000e+00> : vector<8x128xf32>
    %67 = tpu.matmul %65, %52, %cst_32 {dimension_numbers = #tpu.dot_dimension_numbers<[1], [0], [0], [1], [0, 0, 1, 1], [], []>} : vector<8x128xf32>, vector<128x128xf32>, vector<8x128xf32> -> vector<8x128xf32>
    %68 = arith.addf %66, %67 : vector<8x128xf32>
    %69 = math.tanh %68 : vector<8x128xf32>
    %70 = vector.extract_strided_slice %50 {offsets = [32, 0], sizes = [8, 128], strides = [1, 1]} : vector<64x128xf32> to vector<8x128xf32>
    %cst_33 = arith.constant dense<0.000000e+00> : vector<8x128xf32>
    %71 = tpu.matmul %69, %52, %cst_33 {dimension_numbers = #tpu.dot_dimension_numbers<[1], [0], [0], [1], [0, 0, 1, 1], [], []>} : vector<8x128xf32>, vector<128x128xf32>, vector<8x128xf32> -> vector<8x128xf32>
    %72 = arith.addf %70, %71 : vector<8x128xf32>
    %73 = math.tanh %72 : vector<8x128xf32>
    %74 = vector.extract_strided_slice %50 {offsets = [40, 0], sizes = [8, 128], strides = [1, 1]} : vector<64x128xf32> to vector<8x128xf32>
    %cst_34 = arith.constant dense<0.000000e+00> : vector<8x128xf32>
    %75 = tpu.matmul %73, %52, %cst_34 {dimension_numbers = #tpu.dot_dimension_numbers<[1], [0], [0], [1], [0, 0, 1, 1], [], []>} : vector<8x128xf32>, vector<128x128xf32>, vector<8x128xf32> -> vector<8x128xf32>
    %76 = arith.addf %74, %75 : vector<8x128xf32>
    %77 = math.tanh %76 : vector<8x128xf32>
    %78 = vector.extract_strided_slice %50 {offsets = [48, 0], sizes = [8, 128], strides = [1, 1]} : vector<64x128xf32> to vector<8x128xf32>
    %cst_35 = arith.constant dense<0.000000e+00> : vector<8x128xf32>
    %79 = tpu.matmul %77, %52, %cst_35 {dimension_numbers = #tpu.dot_dimension_numbers<[1], [0], [0], [1], [0, 0, 1, 1], [], []>} : vector<8x128xf32>, vector<128x128xf32>, vector<8x128xf32> -> vector<8x128xf32>
    %80 = arith.addf %78, %79 : vector<8x128xf32>
    %81 = math.tanh %80 : vector<8x128xf32>
    %82 = vector.extract_strided_slice %50 {offsets = [56, 0], sizes = [8, 128], strides = [1, 1]} : vector<64x128xf32> to vector<8x128xf32>
    %cst_36 = arith.constant dense<0.000000e+00> : vector<8x128xf32>
    %83 = tpu.matmul %81, %52, %cst_36 {dimension_numbers = #tpu.dot_dimension_numbers<[1], [0], [0], [1], [0, 0, 1, 1], [], []>} : vector<8x128xf32>, vector<128x128xf32>, vector<8x128xf32> -> vector<8x128xf32>
    %84 = arith.addf %82, %83 : vector<8x128xf32>
    %85 = math.tanh %84 : vector<8x128xf32>
    %c0_37 = arith.constant 0 : index
    %c0_38 = arith.constant 0 : index
    %86 = vector.load %arg6[%c0_37, %c0_38] : memref<128x128xf32, #tpu.memory_space<vmem>>, vector<128x128xf32>
    %cst_39 = arith.constant dense<0.000000e+00> : vector<8x128xf32>
    %87 = tpu.matmul %85, %86, %cst_39 {dimension_numbers = #tpu.dot_dimension_numbers<[1], [0], [0], [1], [0, 0, 1, 1], [], []>} : vector<8x128xf32>, vector<128x128xf32>, vector<8x128xf32> -> vector<8x128xf32>
    %c0_40 = arith.constant 0 : index
    %c0_41 = arith.constant 0 : index
    %88 = vector.load %arg7[%c0_40, %c0_41] : memref<1x128xf32, #tpu.memory_space<vmem>>, vector<1x128xf32>
    %89 = vector.broadcast %88 : vector<1x128xf32> to vector<8x128xf32>
    %90 = arith.addf %87, %89 : vector<8x128xf32>
    %c0_42 = arith.constant 0 : index
    %c0_43 = arith.constant 0 : index
    %91 = vector.load %arg8[%c0_42, %c0_43] : memref<8x128xf32, #tpu.memory_space<vmem>>, vector<8x128xf32>
    tpu.vector_store %arg8[%c0_42, %c0_43], %90 {strides = array<i32>} : memref<8x128xf32, #tpu.memory_space<vmem>>, vector<8x128xf32>,
    return
  }
  func.func @transform_0(%arg0: i32) -> (i32, i32, i32) {
    %c0_i32 = arith.constant 0 : i32
    %c0_i32_0 = arith.constant 0 : i32
    %c0_i32_1 = arith.constant 0 : i32
    return %c0_i32, %arg0, %c0_i32_0 : i32, i32, i32
  }
  func.func @transform_1(%arg0: i32) -> (i32, i32) {
    %c0_i32 = arith.constant 0 : i32
    %c0_i32_0 = arith.constant 0 : i32
    %c0_i32_1 = arith.constant 0 : i32
    return %c0_i32, %c0_i32_0 : i32, i32
  }
  func.func @transform_2(%arg0: i32) -> (i32, i32, i32) {
    %c0_i32 = arith.constant 0 : i32
    %c0_i32_0 = arith.constant 0 : i32
    %c0_i32_1 = arith.constant 0 : i32
    %c0_i32_2 = arith.constant 0 : i32
    return %c0_i32, %c0_i32_0, %c0_i32_1 : i32, i32, i32
  }
  func.func @transform_3(%arg0: i32) -> (i32, i32, i32) {
    %c0_i32 = arith.constant 0 : i32
    %c0_i32_0 = arith.constant 0 : i32
    %c0_i32_1 = arith.constant 0 : i32
    %c0_i32_2 = arith.constant 0 : i32
    return %c0_i32, %c0_i32_0, %c0_i32_1 : i32, i32, i32
  }
  func.func @transform_4(%arg0: i32) -> (i32, i32, i32) {
    %c0_i32 = arith.constant 0 : i32
    %c0_i32_0 = arith.constant 0 : i32
    %c0_i32_1 = arith.constant 0 : i32
    %c0_i32_2 = arith.constant 0 : i32
    return %c0_i32, %c0_i32_0, %c0_i32_1 : i32, i32, i32
  }
  func.func @transform_5(%arg0: i32) -> (i32, i32) {
    %c0_i32 = arith.constant 0 : i32
    %c0_i32_0 = arith.constant 0 : i32
    %c0_i32_1 = arith.constant 0 : i32
    return %c0_i32, %c0_i32_0 : i32, i32
  }
  func.func @transform_6(%arg0: i32) -> (i32, i32) {
    %c0_i32 = arith.constant 0 : i32
    %c0_i32_0 = arith.constant 0 : i32
    %c0_i32_1 = arith.constant 0 : i32
    return %c0_i32, %c0_i32_0 : i32, i32
  }
  func.func @transform_7(%arg0: i32) -> (i32, i32) {
    %c0_i32 = arith.constant 0 : i32
    %c0_i32_0 = arith.constant 0 : i32
    return %arg0, %c0_i32 : i32, i32
  }
}

</mosaic_0001>

<llo_original>
// kernel: tpu_custom_call.1
$region0: #{tpu_custom_call.1}
  #allocation0 [shape = 'u32[]', space=smem, size = 0x4, offset = 0x4, fixed_abs, tag = 'smem constant byte address 0x4 - core index']
  #allocation1 [shape = 'u32[144,128]{1,0:T(1,128)}', space=vmem, size = 0x12000, scoped, tag = 'internal scratch']
  %s0 = inlined_call_operand.hbm [shape: f32[8,8,128], index: 0, kind: input, shape index: {}]
  %s1 = inlined_call_operand.hbm [shape: f32[128,128], index: 1, kind: input, shape index: {}]
  %s2 = inlined_call_operand.hbm [shape: f32[1,128,128], index: 2, kind: input, shape index: {}]
  %s3 = inlined_call_operand.hbm [shape: f32[2,128,128], index: 3, kind: input, shape index: {}]
  %s4 = inlined_call_operand.vmem [shape: f32[2,1,128], index: 4, kind: input, shape index: {}]
  %s5 = inlined_call_operand.hbm [shape: f32[128,128], index: 5, kind: input, shape index: {}]
  %s6 = inlined_call_operand.vmem [shape: f32[1,128], index: 6, kind: input, shape index: {}]
  %s7 = inlined_call_operand.hbm [shape: f32[8,128], index: 7, kind: output, shape index: {}]
  %s8 = sld [smem:[#allocation0]]
  $region58: #{tpu_custom_call.1} parent=0
    _
  %s10 = ssub.s32 1, %s8
  %s11 = scalar_select 0, %s10, %s8
  $region1: #{tpu_custom_call.1} parent=0
    #allocation2 [shape = 'u8[32768]{0}', space=vmem, size = 0x8000, scoped, tag = 'input window, operand 0, single buffered']
    #allocation3 [shape = 's32[1]{0}', space=sflag, size = 0x4, scoped, tag = 'scoped memory for tpu_custom_call.1']
    #allocation4 [shape = 's32[1]{0}', space=sflag, size = 0x4, scoped, tag = 'scoped memory for tpu_custom_call.1']
    #allocation5 [shape = 'u8[65536]{0}', space=vmem, size = 0x10000, scoped, tag = 'input window, operand 1, single buffered']
    #allocation6 [shape = 's32[1]{0}', space=sflag, size = 0x4, scoped, tag = 'scoped memory for tpu_custom_call.1']
    #allocation7 [shape = 'u8[65536]{0}', space=vmem, size = 0x10000, scoped, tag = 'input window, operand 2, single buffered']
    #allocation8 [shape = 'u8[131072]{0}', space=vmem, size = 0x20000, scoped, tag = 'input window, operand 3, single buffered']
    #allocation9 [shape = 's32[1]{0}', space=sflag, size = 0x4, scoped, tag = 'scoped memory for tpu_custom_call.1']
    #allocation10 [shape = 'u8[65536]{0}', space=vmem, size = 0x10000, scoped, tag = 'input window, operand 5, single buffered']
    #allocation11 [shape = 'u8[4096]{0}', space=vmem, size = 0x1000, scoped, tag = 'output window, operand 0, single buffered']
    %12 = vsyncpa [#allocation3], 0
    %13 = vsyncpa [#allocation6], 0
    %14 = vsyncpa [#allocation9], 0
    %15 = vsyncpa [#allocation4], 0
    // Predicated region
    $region2: #{tpu_custom_call.1} parent=1 // pred_check
      _
    $region3: #{tpu_custom_call.1} parent=1 // pred_check_branch
      %17 = sbr.rel (0) target = $region5
    $region4: #{tpu_custom_call.1} parent=1 // pred_region
      %s19 = ssub.s32 1024, 1024
      %20 = vsyncadd [#allocation3], %s19
      %s21 = sshll.u32 [#allocation2], 4
      %s22 = int_to_ptr.vmem [resolvable:$true] %s21
      %27 = dma.hbm_to_vmem [thread:$0]  %s0, 1024, %s22, [#allocation3], 128, 128, 8
    $region5: #{tpu_custom_call.1} parent=1 // pred_fallthru
      _
    // Predicated region
    $region6: #{tpu_custom_call.1} parent=1 // pred_check
      _
    $region7: #{tpu_custom_call.1} parent=1 // pred_check_branch
      %29 = sbr.rel (0) target = $region9
    $region8: #{tpu_custom_call.1} parent=1 // pred_region
      %s31 = ssub.s32 2048, 2048
      %32 = vsyncadd [#allocation6], %s31
      %s33 = sshll.u32 [#allocation5], 4
      %s34 = int_to_ptr.vmem [resolvable:$true] %s33
      %39 = dma.hbm_to_vmem [thread:$0]  %s1, 2048, %s34, [#allocation6], 128, 128, 8
    $region9: #{tpu_custom_call.1} parent=1 // pred_fallthru
      _
    // Predicated region
    $region10: #{tpu_custom_call.1} parent=1 // pred_check
      _
    $region11: #{tpu_custom_call.1} parent=1 // pred_check_branch
      %41 = sbr.rel (0) target = $region13
    $region12: #{tpu_custom_call.1} parent=1 // pred_region
      %s43 = ssub.s32 2048, 2048
      %44 = vsyncadd [#allocation6], %s43
      %s45 = sshll.u32 [#allocation7], 4
      %s46 = int_to_ptr.vmem [resolvable:$true] %s45
      %51 = dma.hbm_to_vmem [thread:$0]  %s2, 2048, %s46, [#allocation6], 128, 128, 8
    $region13: #{tpu_custom_call.1} parent=1 // pred_fallthru
      _
    // Predicated region
    $region14: #{tpu_custom_call.1} parent=1 // pred_check
      _
    $region15: #{tpu_custom_call.1} parent=1 // pred_check_branch
      %53 = sbr.rel (0) target = $region17
    $region16: #{tpu_custom_call.1} parent=1 // pred_region
      %s55 = ssub.s32 4096, 4096
      %56 = vsyncadd [#allocation9], %s55
      %s57 = sshll.u32 [#allocation8], 4
      %s58 = int_to_ptr.vmem [resolvable:$true] %s57
      %63 = dma.hbm_to_vmem [thread:$0]  %s3, 4096, %s58, [#allocation9], 128, 128, 8
    $region17: #{tpu_custom_call.1} parent=1 // pred_fallthru
      _
    // Predicated region
    $region18: #{tpu_custom_call.1} parent=1 // pred_check
      _
    $region19: #{tpu_custom_call.1} parent=1 // pred_check_branch
      %65 = sbr.rel (0) target = $region21
    $region20: #{tpu_custom_call.1} parent=1 // pred_region
      _
    $region21: #{tpu_custom_call.1} parent=1 // pred_fallthru
      _
    // Predicated region
    $region22: #{tpu_custom_call.1} parent=1 // pred_check
      _
    $region23: #{tpu_custom_call.1} parent=1 // pred_check_branch
      %67 = sbr.rel (0) target = $region25
    $region24: #{tpu_custom_call.1} parent=1 // pred_region
      %s69 = ssub.s32 2048, 2048
      %70 = vsyncadd [#allocation9], %s69
      %s71 = sshll.u32 [#allocation10], 4
      %s72 = int_to_ptr.vmem [resolvable:$true] %s71
      %77 = dma.hbm_to_vmem [thread:$0]  %s5, 2048, %s72, [#allocation9], 128, 128, 8
    $region25: #{tpu_custom_call.1} parent=1 // pred_fallthru
      _
    // Predicated region
    $region26: #{tpu_custom_call.1} parent=1 // pred_check
      _
    $region27: #{tpu_custom_call.1} parent=1 // pred_check_branch
      %79 = sbr.rel (0) target = $region29
    $region28: #{tpu_custom_call.1} parent=1 // pred_region
      _
    $region29: #{tpu_custom_call.1} parent=1 // pred_fallthru
      _
    // Predicated region
    $region30: #{tpu_custom_call.1} parent=1 // pred_check
      _
    $region31: #{tpu_custom_call.1} parent=1 // pred_check_branch
      %81 = sbr.rel (0) target = $region33
    $region32: #{tpu_custom_call.1} parent=1 // pred_region
      %82 = dma.done [#allocation3], 1024
    $region33: #{tpu_custom_call.1} parent=1 // pred_fallthru
      _
    // Predicated region
    $region34: #{tpu_custom_call.1} parent=1 // pred_check
      _
    $region35: #{tpu_custom_call.1} parent=1 // pred_check_branch
      %84 = sbr.rel (0) target = $region37
    $region36: #{tpu_custom_call.1} parent=1 // pred_region
      %85 = dma.done [#allocation6], 2048
    $region37: #{tpu_custom_call.1} parent=1 // pred_fallthru
      _
    // Predicated region
    $region38: #{tpu_custom_call.1} parent=1 // pred_check
      _
    $region39: #{tpu_custom_call.1} parent=1 // pred_check_branch
      %87 = sbr.rel (0) target = $region41
    $region40: #{tpu_custom_call.1} parent=1 // pred_region
      %88 = dma.done [#allocation6], 2048
    $region41: #{tpu_custom_call.1} parent=1 // pred_fallthru
      _
    // Predicated region
    $region42: #{tpu_custom_call.1} parent=1 // pred_check
      _
    $region43: #{tpu_custom_call.1} parent=1 // pred_check_branch
      %90 = sbr.rel (0) target = $region45
    $region44: #{tpu_custom_call.1} parent=1 // pred_region
      %91 = dma.done [#allocation9], 4096
    $region45: #{tpu_custom_call.1} parent=1 // pred_fallthru
      _
    // Predicated region
    $region46: #{tpu_custom_call.1} parent=1 // pred_check
      _
    $region47: #{tpu_custom_call.1} parent=1 // pred_check_branch
      %93 = sbr.rel (0) target = $region49
    $region48: #{tpu_custom_call.1} parent=1 // pred_region
      %94 = dma.done [#allocation9], 2048
    $region49: #{tpu_custom_call.1} parent=1 // pred_fallthru
      _
    %v95 = vld [vmem:[#allocation2] sm:$0xff]
    %v96 = vld [vmem:[#allocation2 + $0x8] sm:$0xff]
    %v97 = vld [vmem:[#allocation2 + $0x10] sm:$0xff]
    %v98 = vld [vmem:[#allocation2 + $0x18] sm:$0xff]
    %v99 = vld [vmem:[#allocation2 + $0x20] sm:$0xff]
    %v100 = vld [vmem:[#allocation2 + $0x28] sm:$0xff]
    %v101 = vld [vmem:[#allocation2 + $0x30] sm:$0xff]
    %v102 = vld [vmem:[#allocation2 + $0x38] sm:$0xff]
    %v103 = vld [vmem:[#allocation5] sm:$0xff]
    %v104 = vld [vmem:[#allocation5 + $0x8] sm:$0xff]
    %v105 = vld [vmem:[#allocation5 + $0x10] sm:$0xff]
    %v106 = vld [vmem:[#allocation5 + $0x18] sm:$0xff]
    %v107 = vld [vmem:[#allocation5 + $0x20] sm:$0xff]
    %v108 = vld [vmem:[#allocation5 + $0x28] sm:$0xff]
    %v109 = vld [vmem:[#allocation5 + $0x30] sm:$0xff]
    %v110 = vld [vmem:[#allocation5 + $0x38] sm:$0xff]
    %v111 = vld [vmem:[#allocation5 + $0x40] sm:$0xff]
    %v112 = vld [vmem:[#allocation5 + $0x48] sm:$0xff]
    %v113 = vld [vmem:[#allocation5 + $0x50] sm:$0xff]
    %v114 = vld [vmem:[#allocation5 + $0x58] sm:$0xff]
    %v115 = vld [vmem:[#allocation5 + $0x60] sm:$0xff]
    %v116 = vld [vmem:[#allocation5 + $0x68] sm:$0xff]
    %v117 = vld [vmem:[#allocation5 + $0x70] sm:$0xff]
    %v118 = vld [vmem:[#allocation5 + $0x78] sm:$0xff]
    %v119 = vld [vmem:[%s4] sm:$0x1]
    %v121 = vlaneseq
    %v122 = vshrl.u32 %v121, 7
    %v123 = vsub.s32 0, %v122
    %v124 = vrot.slane %v119, %v123
    %126 = vmatprep.subr.mxu0 0.0
    %127 = vmatpush1.msra.mxu0 %v103
    %128 = vmatprep.subr.mxu0 0.0
    %129 = vmatpush1.msra.mxu0 %v104
    %130 = vmatprep.subr.mxu0 0.0
    %131 = vmatpush1.msra.mxu0 %v105
    %132 = vmatprep.subr.mxu0 0.0
    %133 = vmatpush1.msra.mxu0 %v106
    %134 = vmatprep.subr.mxu0 0.0
    %135 = vmatpush1.msra.mxu0 %v107
    %136 = vmatprep.subr.mxu0 0.0
    %137 = vmatpush1.msra.mxu0 %v108
    %138 = vmatprep.subr.mxu0 0.0
    %139 = vmatpush1.msra.mxu0 %v109
    %140 = vmatprep.subr.mxu0 0.0
    %141 = vmatpush1.msra.mxu0 %v110
    %142 = vmatprep.subr.mxu0 0.0
    %143 = vmatpush1.msra.mxu0 %v111
    %144 = vmatprep.subr.mxu0 0.0
    %145 = vmatpush1.msra.mxu0 %v112
    %146 = vmatprep.subr.mxu0 0.0
    %147 = vmatpush1.msra.mxu0 %v113
    %148 = vmatprep.subr.mxu0 0.0
    %149 = vmatpush1.msra.mxu0 %v114
    %150 = vmatprep.subr.mxu0 0.0
    %151 = vmatpush1.msra.mxu0 %v115
    %152 = vmatprep.subr.mxu0 0.0
    %153 = vmatpush1.msra.mxu0 %v116
    %154 = vmatprep.subr.mxu0 0.0
    %155 = vmatpush1.msra.mxu0 %v117
    %156 = vmatprep.subr.mxu0 0.0
    %157 = vmatpush1.msra.mxu0 %v118
    %158 = vmatprep.subr.mxu0 0.0
    %159 = vmatpush1.msra.mxu0 0.0
    %160 = vmatprep.subr.mxu0 0.0
    %161 = vmatpush1.msra.mxu0 0.0
    %162 = vmatprep.subr.mxu0 0.0
    %163 = vmatpush1.msra.mxu0 0.0
    %164 = vmatprep.subr.mxu0 0.0
    %165 = vmatpush1.msra.mxu0 0.0
    %166 = vmatprep.subr.mxu0 0.0
    %167 = vmatpush1.msra.mxu0 0.0
    %168 = vmatprep.subr.mxu0 0.0
    %169 = vmatpush1.msra.mxu0 0.0
    %170 = vmatprep.subr.mxu0 0.0
    %171 = vmatpush1.msra.mxu0 0.0
    %172 = vmatprep.subr.mxu0 0.0
    %173 = vmatpush1.msra.mxu0 0.0
    %174 = vmatprep.subr.mxu0 0.0
    %175 = vmatpush1.msra.mxu0 0.0
    %176 = vmatprep.subr.mxu0 0.0
    %177 = vmatpush1.msra.mxu0 0.0
    %178 = vmatprep.subr.mxu0 0.0
    %179 = vmatpush1.msra.mxu0 0.0
    %180 = vmatprep.subr.mxu0 0.0
    %181 = vmatpush1.msra.mxu0 0.0
    %182 = vmatprep.subr.mxu0 0.0
    %183 = vmatpush1.msra.mxu0 0.0
    %184 = vmatprep.subr.mxu0 0.0
    %185 = vmatpush1.msra.mxu0 0.0
    %186 = vmatprep.subr.mxu0 0.0
    %187 = vmatpush1.msra.mxu0 0.0
    %188 = vmatprep.subr.mxu0 0.0
    %189 = vmatpush1.msra.mxu0 0.0
    %190 = vmatprep.mubr.f32.mxu0 0.0
    %191 = vmatmul.mubr.f32.gmra.mrb[0].mxu0 %v95
    %v192 = vpop.f32.mrb[0].mxu0
    %v193 = vadd.f32 %v124, %v192
    %v194 = vpop.f32.mrb[0].mxu0
    %195 = vmatprep.mubr.f32.mxu0 0.0
    %196 = vmatmul.mubr.f32.gmra.mrb[0].mxu0 %v96
    %v197 = vpop.f32.mrb[0].mxu0
    %v198 = vadd.f32 %v124, %v197
    %v199 = vpop.f32.mrb[0].mxu0
    %200 = vmatprep.mubr.f32.mxu0 0.0
    %201 = vmatmul.mubr.f32.gmra.mrb[0].mxu0 %v97
    %v202 = vpop.f32.mrb[0].mxu0
    %v203 = vadd.f32 %v124, %v202
    %v204 = vpop.f32.mrb[0].mxu0
    %205 = vmatprep.mubr.f32.mxu0 0.0
    %206 = vmatmul.mubr.f32.gmra.mrb[0].mxu0 %v98
    %v207 = vpop.f32.mrb[0].mxu0
    %v208 = vadd.f32 %v124, %v207
    %v209 = vpop.f32.mrb[0].mxu0
    %210 = vmatprep.mubr.f32.mxu0 0.0
    %211 = vmatmul.mubr.f32.gmra.mrb[0].mxu0 %v99
    %v212 = vpop.f32.mrb[0].mxu0
    %v213 = vadd.f32 %v124, %v212
    %v214 = vpop.f32.mrb[0].mxu0
    %215 = vmatprep.mubr.f32.mxu0 0.0
    %216 = vmatmul.mubr.f32.gmra.mrb[0].mxu0 %v100
    %v217 = vpop.f32.mrb[0].mxu0
    %v218 = vadd.f32 %v124, %v217
    %v219 = vpop.f32.mrb[0].mxu0
    %220 = vmatprep.mubr.f32.mxu0 0.0
    %221 = vmatmul.mubr.f32.gmra.mrb[0].mxu0 %v101
    %v222 = vpop.f32.mrb[0].mxu0
    %v223 = vadd.f32 %v124, %v222
    %v224 = vpop.f32.mrb[0].mxu0
    %225 = vmatprep.mubr.f32.mxu0 0.0
    %226 = vmatmul.mubr.f32.gmra.mrb[0].mxu0 %v102
    %v227 = vpop.f32.mrb[0].mxu0
    %v228 = vadd.f32 %v124, %v227
    %v229 = vpop.f32.mrb[0].mxu0
    %230 = vdwg.mxu0
    %v231 = vld [vmem:[#allocation8] sm:$0xff]
    %v232 = vld [vmem:[#allocation8 + $0x8] sm:$0xff]
    %v233 = vld [vmem:[#allocation8 + $0x10] sm:$0xff]
    %v234 = vld [vmem:[#allocation8 + $0x18] sm:$0xff]
    %v235 = vld [vmem:[#allocation8 + $0x20] sm:$0xff]
    %v236 = vld [vmem:[#allocation8 + $0x28] sm:$0xff]
    %v237 = vld [vmem:[#allocation8 + $0x30] sm:$0xff]
    %v238 = vld [vmem:[#allocation8 + $0x38] sm:$0xff]
    %v239 = vld [vmem:[#allocation8 + $0x40] sm:$0xff]
    %v240 = vld [vmem:[#allocation8 + $0x48] sm:$0xff]
    %v241 = vld [vmem:[#allocation8 + $0x50] sm:$0xff]
    %v242 = vld [vmem:[#allocation8 + $0x58] sm:$0xff]
    %v243 = vld [vmem:[#allocation8 + $0x60] sm:$0xff]
    %v244 = vld [vmem:[#allocation8 + $0x68] sm:$0xff]
    %v245 = vld [vmem:[#allocation8 + $0x70] sm:$0xff]
    %v246 = vld [vmem:[#allocation8 + $0x78] sm:$0xff]
    %247 = vmatprep.subr.mxu0 0.0
    %248 = vmatpush1.msra.mxu0 %v231
    %249 = vmatprep.subr.mxu0 0.0
    %250 = vmatpush1.msra.mxu0 %v232
    %251 = vmatprep.subr.mxu0 0.0
    %252 = vmatpush1.msra.mxu0 %v233
    %253 = vmatprep.subr.mxu0 0.0
    %254 = vmatpush1.msra.mxu0 %v234
    %255 = vmatprep.subr.mxu0 0.0
    %256 = vmatpush1.msra.mxu0 %v235
    %257 = vmatprep.subr.mxu0 0.0
    %258 = vmatpush1.msra.mxu0 %v236
    %259 = vmatprep.subr.mxu0 0.0
    %260 = vmatpush1.msra.mxu0 %v237
    %261 = vmatprep.subr.mxu0 0.0
    %262 = vmatpush1.msra.mxu0 %v238
    %263 = vmatprep.subr.mxu0 0.0
    %264 = vmatpush1.msra.mxu0 %v239
    %265 = vmatprep.subr.mxu0 0.0
    %266 = vmatpush1.msra.mxu0 %v240
    %267 = vmatprep.subr.mxu0 0.0
    %268 = vmatpush1.msra.mxu0 %v241
    %269 = vmatprep.subr.mxu0 0.0
    %270 = vmatpush1.msra.mxu0 %v242
    %271 = vmatprep.subr.mxu0 0.0
    %272 = vmatpush1.msra.mxu0 %v243
    %273 = vmatprep.subr.mxu0 0.0
    %274 = vmatpush1.msra.mxu0 %v244
    %275 = vmatprep.subr.mxu0 0.0
    %276 = vmatpush1.msra.mxu0 %v245
    %277 = vmatprep.subr.mxu0 0.0
    %278 = vmatpush1.msra.mxu0 %v246
    %279 = vmatprep.subr.mxu0 0.0
    %280 = vmatpush1.msra.mxu0 0.0
    %281 = vmatprep.subr.mxu0 0.0
    %282 = vmatpush1.msra.mxu0 0.0
    %283 = vmatprep.subr.mxu0 0.0
    %284 = vmatpush1.msra.mxu0 0.0
    %285 = vmatprep.subr.mxu0 0.0
    %286 = vmatpush1.msra.mxu0 0.0
    %287 = vmatprep.subr.mxu0 0.0
    %288 = vmatpush1.msra.mxu0 0.0
    %289 = vmatprep.subr.mxu0 0.0
    %290 = vmatpush1.msra.mxu0 0.0
    %291 = vmatprep.subr.mxu0 0.0
    %292 = vmatpush1.msra.mxu0 0.0
    %293 = vmatprep.subr.mxu0 0.0
    %294 = vmatpush1.msra.mxu0 0.0
    %295 = vmatprep.subr.mxu0 0.0
    %296 = vmatpush1.msra.mxu0 0.0
    %297 = vmatprep.subr.mxu0 0.0
    %298 = vmatpush1.msra.mxu0 0.0
    %299 = vmatprep.subr.mxu0 0.0
    %300 = vmatpush1.msra.mxu0 0.0
    %301 = vmatprep.subr.mxu0 0.0
    %302 = vmatpush1.msra.mxu0 0.0
    %303 = vmatprep.subr.mxu0 0.0
    %304 = vmatpush1.msra.mxu0 0.0
    %305 = vmatprep.subr.mxu0 0.0
    %306 = vmatpush1.msra.mxu0 0.0
    %307 = vmatprep.subr.mxu0 0.0
    %308 = vmatpush1.msra.mxu0 0.0
    %309 = vmatprep.subr.mxu0 0.0
    %310 = vmatpush1.msra.mxu0 0.0
    %311 = vmatprep.mubr.f32.mxu0 0.0
    %312 = vmatmul.mubr.f32.gmra.mrb[0].mxu0 0.0
    %v313 = vpop.f32.mrb[0].mxu0
    %v314 = vadd.f32 0.0, %v313
    %v315 = vpop.f32.mrb[0].mxu0
    %316 = vdwg.mxu0
    %v317 = vadd.f32 %v193, %v314
    %v318 = vtanh.pop %v317
    %319 = vmatprep.subr.mxu0 0.0
    %320 = vmatpush1.msra.mxu0 %v231
    %321 = vmatprep.subr.mxu0 0.0
    %322 = vmatpush1.msra.mxu0 %v232
    %323 = vmatprep.subr.mxu0 0.0
    %324 = vmatpush1.msra.mxu0 %v233
    %325 = vmatprep.subr.mxu0 0.0
    %326 = vmatpush1.msra.mxu0 %v234
    %327 = vmatprep.subr.mxu0 0.0
    %328 = vmatpush1.msra.mxu0 %v235
    %329 = vmatprep.subr.mxu0 0.0
    %330 = vmatpush1.msra.mxu0 %v236
    %331 = vmatprep.subr.mxu0 0.0
    %332 = vmatpush1.msra.mxu0 %v237
    %333 = vmatprep.subr.mxu0 0.0
    %334 = vmatpush1.msra.mxu0 %v238
    %335 = vmatprep.subr.mxu0 0.0
    %336 = vmatpush1.msra.mxu0 %v239
    %337 = vmatprep.subr.mxu0 0.0
    %338 = vmatpush1.msra.mxu0 %v240
    %339 = vmatprep.subr.mxu0 0.0
    %340 = vmatpush1.msra.mxu0 %v241
    %341 = vmatprep.subr.mxu0 0.0
    %342 = vmatpush1.msra.mxu0 %v242
    %343 = vmatprep.subr.mxu0 0.0
    %344 = vmatpush1.msra.mxu0 %v243
    %345 = vmatprep.subr.mxu0 0.0
    %346 = vmatpush1.msra.mxu0 %v244
    %347 = vmatprep.subr.mxu0 0.0
    %348 = vmatpush1.msra.mxu0 %v245
    %349 = vmatprep.subr.mxu0 0.0
    %350 = vmatpush1.msra.mxu0 %v246
    %351 = vmatprep.subr.mxu0 0.0
    %352 = vmatpush1.msra.mxu0 0.0
    %353 = vmatprep.subr.mxu0 0.0
    %354 = vmatpush1.msra.mxu0 0.0
    %355 = vmatprep.subr.mxu0 0.0
    %356 = vmatpush1.msra.mxu0 0.0
    %357 = vmatprep.subr.mxu0 0.0
    %358 = vmatpush1.msra.mxu0 0.0
    %359 = vmatprep.subr.mxu0 0.0
    %360 = vmatpush1.msra.mxu0 0.0
    %361 = vmatprep.subr.mxu0 0.0
    %362 = vmatpush1.msra.mxu0 0.0
    %363 = vmatprep.subr.mxu0 0.0
    %364 = vmatpush1.msra.mxu0 0.0
    %365 = vmatprep.subr.mxu0 0.0
    %366 = vmatpush1.msra.mxu0 0.0
    %367 = vmatprep.subr.mxu0 0.0
    %368 = vmatpush1.msra.mxu0 0.0
    %369 = vmatprep.subr.mxu0 0.0
    %370 = vmatpush1.msra.mxu0 0.0
    %371 = vmatprep.subr.mxu0 0.0
    %372 = vmatpush1.msra.mxu0 0.0
    %373 = vmatprep.subr.mxu0 0.0
    %374 = vmatpush1.msra.mxu0 0.0
    %375 = vmatprep.subr.mxu0 0.0
    %376 = vmatpush1.msra.mxu0 0.0
    %377 = vmatprep.subr.mxu0 0.0
    %378 = vmatpush1.msra.mxu0 0.0
    %379 = vmatprep.subr.mxu0 0.0
    %380 = vmatpush1.msra.mxu0 0.0
    %381 = vmatprep.subr.mxu0 0.0
    %382 = vmatpush1.msra.mxu0 0.0
    %383 = vmatprep.mubr.f32.mxu0 0.0
    %384 = vmatmul.mubr.f32.gmra.mrb[0].mxu0 %v318
    %v385 = vpop.f32.mrb[0].mxu0
    %v386 = vadd.f32 0.0, %v385
    %v387 = vpop.f32.mrb[0].mxu0
    %388 = vdwg.mxu0
    %v389 = vadd.f32 %v198, %v386
    %v390 = vtanh.pop %v389
    %391 = vmatprep.subr.mxu0 0.0
    %392 = vmatpush1.msra.mxu0 %v231
    %393 = vmatprep.subr.mxu0 0.0
    %394 = vmatpush1.msra.mxu0 %v232
    %395 = vmatprep.subr.mxu0 0.0
    %396 = vmatpush1.msra.mxu0 %v233
    %397 = vmatprep.subr.mxu0 0.0
    %398 = vmatpush1.msra.mxu0 %v234
    %399 = vmatprep.subr.mxu0 0.0
    %400 = vmatpush1.msra.mxu0 %v235
    %401 = vmatprep.subr.mxu0 0.0
    %402 = vmatpush1.msra.mxu0 %v236
    %403 = vmatprep.subr.mxu0 0.0
    %404 = vmatpush1.msra.mxu0 %v237
    %405 = vmatprep.subr.mxu0 0.0
    %406 = vmatpush1.msra.mxu0 %v238
    %407 = vmatprep.subr.mxu0 0.0
    %408 = vmatpush1.msra.mxu0 %v239
    %409 = vmatprep.subr.mxu0 0.0
    %410 = vmatpush1.msra.mxu0 %v240
    %411 = vmatprep.subr.mxu0 0.0
    %412 = vmatpush1.msra.mxu0 %v241
    %413 = vmatprep.subr.mxu0 0.0
    %414 = vmatpush1.msra.mxu0 %v242
    %415 = vmatprep.subr.mxu0 0.0
    %416 = vmatpush1.msra.mxu0 %v243
    %417 = vmatprep.subr.mxu0 0.0
    %418 = vmatpush1.msra.mxu0 %v244
    %419 = vmatprep.subr.mxu0 0.0
    %420 = vmatpush1.msra.mxu0 %v245
    %421 = vmatprep.subr.mxu0 0.0
    %422 = vmatpush1.msra.mxu0 %v246
    %423 = vmatprep.subr.mxu0 0.0
    %424 = vmatpush1.msra.mxu0 0.0
    %425 = vmatprep.subr.mxu0 0.0
    %426 = vmatpush1.msra.mxu0 0.0
    %427 = vmatprep.subr.mxu0 0.0
    %428 = vmatpush1.msra.mxu0 0.0
    %429 = vmatprep.subr.mxu0 0.0
    %430 = vmatpush1.msra.mxu0 0.0
    %431 = vmatprep.subr.mxu0 0.0
    %432 = vmatpush1.msra.mxu0 0.0
    %433 = vmatprep.subr.mxu0 0.0
    %434 = vmatpush1.msra.mxu0 0.0
    %435 = vmatprep.subr.mxu0 0.0
    %436 = vmatpush1.msra.mxu0 0.0
    %437 = vmatprep.subr.mxu0 0.0
    %438 = vmatpush1.msra.mxu0 0.0
    %439 = vmatprep.subr.mxu0 0.0
    %440 = vmatpush1.msra.mxu0 0.0
    %441 = vmatprep.subr.mxu0 0.0
    %442 = vmatpush1.msra.mxu0 0.0
    %443 = vmatprep.subr.mxu0 0.0
    %444 = vmatpush1.msra.mxu0 0.0
    %445 = vmatprep.subr.mxu0 0.0
    %446 = vmatpush1.msra.mxu0 0.0
    %447 = vmatprep.subr.mxu0 0.0
    %448 = vmatpush1.msra.mxu0 0.0
    %449 = vmatprep.subr.mxu0 0.0
    %450 = vmatpush1.msra.mxu0 0.0
    %451 = vmatprep.subr.mxu0 0.0
    %452 = vmatpush1.msra.mxu0 0.0
    %453 = vmatprep.subr.mxu0 0.0
    %454 = vmatpush1.msra.mxu0 0.0
    %455 = vmatprep.mubr.f32.mxu0 0.0
    %456 = vmatmul.mubr.f32.gmra.mrb[0].mxu0 %v390
    %v457 = vpop.f32.mrb[0].mxu0
    %v458 = vadd.f32 0.0, %v457
    %v459 = vpop.f32.mrb[0].mxu0
    %460 = vdwg.mxu0
    %v461 = vadd.f32 %v203, %v458
    %v462 = vtanh.pop %v461
    %463 = vmatprep.subr.mxu0 0.0
    %464 = vmatpush1.msra.mxu0 %v231
    %465 = vmatprep.subr.mxu0 0.0
    %466 = vmatpush1.msra.mxu0 %v232
    %467 = vmatprep.subr.mxu0 0.0
    %468 = vmatpush1.msra.mxu0 %v233
    %469 = vmatprep.subr.mxu0 0.0
    %470 = vmatpush1.msra.mxu0 %v234
    %471 = vmatprep.subr.mxu0 0.0
    %472 = vmatpush1.msra.mxu0 %v235
    %473 = vmatprep.subr.mxu0 0.0
    %474 = vmatpush1.msra.mxu0 %v236
    %475 = vmatprep.subr.mxu0 0.0
    %476 = vmatpush1.msra.mxu0 %v237
    %477 = vmatprep.subr.mxu0 0.0
    %478 = vmatpush1.msra.mxu0 %v238
    %479 = vmatprep.subr.mxu0 0.0
    %480 = vmatpush1.msra.mxu0 %v239
    %481 = vmatprep.subr.mxu0 0.0
    %482 = vmatpush1.msra.mxu0 %v240
    %483 = vmatprep.subr.mxu0 0.0
    %484 = vmatpush1.msra.mxu0 %v241
    %485 = vmatprep.subr.mxu0 0.0
    %486 = vmatpush1.msra.mxu0 %v242
    %487 = vmatprep.subr.mxu0 0.0
    %488 = vmatpush1.msra.mxu0 %v243
    %489 = vmatprep.subr.mxu0 0.0
    %490 = vmatpush1.msra.mxu0 %v244
    %491 = vmatprep.subr.mxu0 0.0
    %492 = vmatpush1.msra.mxu0 %v245
    %493 = vmatprep.subr.mxu0 0.0
    %494 = vmatpush1.msra.mxu0 %v246
    %495 = vmatprep.subr.mxu0 0.0
    %496 = vmatpush1.msra.mxu0 0.0
    %497 = vmatprep.subr.mxu0 0.0
    %498 = vmatpush1.msra.mxu0 0.0
    %499 = vmatprep.subr.mxu0 0.0
    %500 = vmatpush1.msra.mxu0 0.0
    %501 = vmatprep.subr.mxu0 0.0
    %502 = vmatpush1.msra.mxu0 0.0
    %503 = vmatprep.subr.mxu0 0.0
    %504 = vmatpush1.msra.mxu0 0.0
    %505 = vmatprep.subr.mxu0 0.0
    %506 = vmatpush1.msra.mxu0 0.0
    %507 = vmatprep.subr.mxu0 0.0
    %508 = vmatpush1.msra.mxu0 0.0
    %509 = vmatprep.subr.mxu0 0.0
    %510 = vmatpush1.msra.mxu0 0.0
    %511 = vmatprep.subr.mxu0 0.0
    %512 = vmatpush1.msra.mxu0 0.0
    %513 = vmatprep.subr.mxu0 0.0
    %514 = vmatpush1.msra.mxu0 0.0
    %515 = vmatprep.subr.mxu0 0.0
    %516 = vmatpush1.msra.mxu0 0.0
    %517 = vmatprep.subr.mxu0 0.0
    %518 = vmatpush1.msra.mxu0 0.0
    %519 = vmatprep.subr.mxu0 0.0
    %520 = vmatpush1.msra.mxu0 0.0
    %521 = vmatprep.subr.mxu0 0.0
    %522 = vmatpush1.msra.mxu0 0.0
    %523 = vmatprep.subr.mxu0 0.0
    %524 = vmatpush1.msra.mxu0 0.0
    %525 = vmatprep.subr.mxu0 0.0
    %526 = vmatpush1.msra.mxu0 0.0
    %527 = vmatprep.mubr.f32.mxu0 0.0
    %528 = vmatmul.mubr.f32.gmra.mrb[0].mxu0 %v462
    %v529 = vpop.f32.mrb[0].mxu0
    %v530 = vadd.f32 0.0, %v529
    %v531 = vpop.f32.mrb[0].mxu0
    %532 = vdwg.mxu0
    %v533 = vadd.f32 %v208, %v530
    %v534 = vtanh.pop %v533
    %535 = vmatprep.subr.mxu0 0.0
    %536 = vmatpush1.msra.mxu0 %v231
    %537 = vmatprep.subr.mxu0 0.0
    %538 = vmatpush1.msra.mxu0 %v232
    %539 = vmatprep.subr.mxu0 0.0
    %540 = vmatpush1.msra.mxu0 %v233
    %541 = vmatprep.subr.mxu0 0.0
    %542 = vmatpush1.msra.mxu0 %v234
    %543 = vmatprep.subr.mxu0 0.0
    %544 = vmatpush1.msra.mxu0 %v235
    %545 = vmatprep.subr.mxu0 0.0
    %546 = vmatpush1.msra.mxu0 %v236
    %547 = vmatprep.subr.mxu0 0.0
    %548 = vmatpush1.msra.mxu0 %v237
    %549 = vmatprep.subr.mxu0 0.0
    %550 = vmatpush1.msra.mxu0 %v238
    %551 = vmatprep.subr.mxu0 0.0
    %552 = vmatpush1.msra.mxu0 %v239
    %553 = vmatprep.subr.mxu0 0.0
    %554 = vmatpush1.msra.mxu0 %v240
    %555 = vmatprep.subr.mxu0 0.0
    %556 = vmatpush1.msra.mxu0 %v241
    %557 = vmatprep.subr.mxu0 0.0
    %558 = vmatpush1.msra.mxu0 %v242
    %559 = vmatprep.subr.mxu0 0.0
    %560 = vmatpush1.msra.mxu0 %v243
    %561 = vmatprep.subr.mxu0 0.0
    %562 = vmatpush1.msra.mxu0 %v244
    %563 = vmatprep.subr.mxu0 0.0
    %564 = vmatpush1.msra.mxu0 %v245
    %565 = vmatprep.subr.mxu0 0.0
    %566 = vmatpush1.msra.mxu0 %v246
    %567 = vmatprep.subr.mxu0 0.0
    %568 = vmatpush1.msra.mxu0 0.0
    %569 = vmatprep.subr.mxu0 0.0
    %570 = vmatpush1.msra.mxu0 0.0
    %571 = vmatprep.subr.mxu0 0.0
    %572 = vmatpush1.msra.mxu0 0.0
    %573 = vmatprep.subr.mxu0 0.0
    %574 = vmatpush1.msra.mxu0 0.0
    %575 = vmatprep.subr.mxu0 0.0
    %576 = vmatpush1.msra.mxu0 0.0
    %577 = vmatprep.subr.mxu0 0.0
    %578 = vmatpush1.msra.mxu0 0.0
    %579 = vmatprep.subr.mxu0 0.0
    %580 = vmatpush1.msra.mxu0 0.0
    %581 = vmatprep.subr.mxu0 0.0
    %582 = vmatpush1.msra.mxu0 0.0
    %583 = vmatprep.subr.mxu0 0.0
    %584 = vmatpush1.msra.mxu0 0.0
    %585 = vmatprep.subr.mxu0 0.0
    %586 = vmatpush1.msra.mxu0 0.0
    %587 = vmatprep.subr.mxu0 0.0
    %588 = vmatpush1.msra.mxu0 0.0
    %589 = vmatprep.subr.mxu0 0.0
    %590 = vmatpush1.msra.mxu0 0.0
    %591 = vmatprep.subr.mxu0 0.0
    %592 = vmatpush1.msra.mxu0 0.0
    %593 = vmatprep.subr.mxu0 0.0
    %594 = vmatpush1.msra.mxu0 0.0
    %595 = vmatprep.subr.mxu0 0.0
    %596 = vmatpush1.msra.mxu0 0.0
    %597 = vmatprep.subr.mxu0 0.0
    %598 = vmatpush1.msra.mxu0 0.0
    %599 = vmatprep.mubr.f32.mxu0 0.0
    %600 = vmatmul.mubr.f32.gmra.mrb[0].mxu0 %v534
    %v601 = vpop.f32.mrb[0].mxu0
    %v602 = vadd.f32 0.0, %v601
    %v603 = vpop.f32.mrb[0].mxu0
    %604 = vdwg.mxu0
    %v605 = vadd.f32 %v213, %v602
    %v606 = vtanh.pop %v605
    %607 = vmatprep.subr.mxu0 0.0
    %608 = vmatpush1.msra.mxu0 %v231
    %609 = vmatprep.subr.mxu0 0.0
    %610 = vmatpush1.msra.mxu0 %v232
    %611 = vmatprep.subr.mxu0 0.0
    %612 = vmatpush1.msra.mxu0 %v233
    %613 = vmatprep.subr.mxu0 0.0
    %614 = vmatpush1.msra.mxu0 %v234
    %615 = vmatprep.subr.mxu0 0.0
    %616 = vmatpush1.msra.mxu0 %v235
    %617 = vmatprep.subr.mxu0 0.0
    %618 = vmatpush1.msra.mxu0 %v236
    %619 = vmatprep.subr.mxu0 0.0
    %620 = vmatpush1.msra.mxu0 %v237
    %621 = vmatprep.subr.mxu0 0.0
    %622 = vmatpush1.msra.mxu0 %v238
    %623 = vmatprep.subr.mxu0 0.0
    %624 = vmatpush1.msra.mxu0 %v239
    %625 = vmatprep.subr.mxu0 0.0
    %626 = vmatpush1.msra.mxu0 %v240
    %627 = vmatprep.subr.mxu0 0.0
    %628 = vmatpush1.msra.mxu0 %v241
    %629 = vmatprep.subr.mxu0 0.0
    %630 = vmatpush1.msra.mxu0 %v242
    %631 = vmatprep.subr.mxu0 0.0
    %632 = vmatpush1.msra.mxu0 %v243
    %633 = vmatprep.subr.mxu0 0.0
    %634 = vmatpush1.msra.mxu0 %v244
    %635 = vmatprep.subr.mxu0 0.0
    %636 = vmatpush1.msra.mxu0 %v245
    %637 = vmatprep.subr.mxu0 0.0
    %638 = vmatpush1.msra.mxu0 %v246
    %639 = vmatprep.subr.mxu0 0.0
    %640 = vmatpush1.msra.mxu0 0.0
    %641 = vmatprep.subr.mxu0 0.0
    %642 = vmatpush1.msra.mxu0 0.0
    %643 = vmatprep.subr.mxu0 0.0
    %644 = vmatpush1.msra.mxu0 0.0
    %645 = vmatprep.subr.mxu0 0.0
    %646 = vmatpush1.msra.mxu0 0.0
    %647 = vmatprep.subr.mxu0 0.0
    %648 = vmatpush1.msra.mxu0 0.0
    %649 = vmatprep.subr.mxu0 0.0
    %650 = vmatpush1.msra.mxu0 0.0
    %651 = vmatprep.subr.mxu0 0.0
    %652 = vmatpush1.msra.mxu0 0.0
    %653 = vmatprep.subr.mxu0 0.0
    %654 = vmatpush1.msra.mxu0 0.0
    %655 = vmatprep.subr.mxu0 0.0
    %656 = vmatpush1.msra.mxu0 0.0
    %657 = vmatprep.subr.mxu0 0.0
    %658 = vmatpush1.msra.mxu0 0.0
    %659 = vmatprep.subr.mxu0 0.0
    %660 = vmatpush1.msra.mxu0 0.0
    %661 = vmatprep.subr.mxu0 0.0
    %662 = vmatpush1.msra.mxu0 0.0
    %663 = vmatprep.subr.mxu0 0.0
    %664 = vmatpush1.msra.mxu0 0.0
    %665 = vmatprep.subr.mxu0 0.0
    %666 = vmatpush1.msra.mxu0 0.0
    %667 = vmatprep.subr.mxu0 0.0
    %668 = vmatpush1.msra.mxu0 0.0
    %669 = vmatprep.subr.mxu0 0.0
    %670 = vmatpush1.msra.mxu0 0.0
    %671 = vmatprep.mubr.f32.mxu0 0.0
    %672 = vmatmul.mubr.f32.gmra.mrb[0].mxu0 %v606
    %v673 = vpop.f32.mrb[0].mxu0
    %v674 = vadd.f32 0.0, %v673
    %v675 = vpop.f32.mrb[0].mxu0
    %676 = vdwg.mxu0
    %v677 = vadd.f32 %v218, %v674
    %v678 = vtanh.pop %v677
    %679 = vmatprep.subr.mxu0 0.0
    %680 = vmatpush1.msra.mxu0 %v231
    %681 = vmatprep.subr.mxu0 0.0
    %682 = vmatpush1.msra.mxu0 %v232
    %683 = vmatprep.subr.mxu0 0.0
    %684 = vmatpush1.msra.mxu0 %v233
    %685 = vmatprep.subr.mxu0 0.0
    %686 = vmatpush1.msra.mxu0 %v234
    %687 = vmatprep.subr.mxu0 0.0
    %688 = vmatpush1.msra.mxu0 %v235
    %689 = vmatprep.subr.mxu0 0.0
    %690 = vmatpush1.msra.mxu0 %v236
    %691 = vmatprep.subr.mxu0 0.0
    %692 = vmatpush1.msra.mxu0 %v237
    %693 = vmatprep.subr.mxu0 0.0
    %694 = vmatpush1.msra.mxu0 %v238
    %695 = vmatprep.subr.mxu0 0.0
    %696 = vmatpush1.msra.mxu0 %v239
    %697 = vmatprep.subr.mxu0 0.0
    %698 = vmatpush1.msra.mxu0 %v240
    %699 = vmatprep.subr.mxu0 0.0
    %700 = vmatpush1.msra.mxu0 %v241
    %701 = vmatprep.subr.mxu0 0.0
    %702 = vmatpush1.msra.mxu0 %v242
    %703 = vmatprep.subr.mxu0 0.0
    %704 = vmatpush1.msra.mxu0 %v243
    %705 = vmatprep.subr.mxu0 0.0
    %706 = vmatpush1.msra.mxu0 %v244
    %707 = vmatprep.subr.mxu0 0.0
    %708 = vmatpush1.msra.mxu0 %v245
    %709 = vmatprep.subr.mxu0 0.0
    %710 = vmatpush1.msra.mxu0 %v246
    %711 = vmatprep.subr.mxu0 0.0
    %712 = vmatpush1.msra.mxu0 0.0
    %713 = vmatprep.subr.mxu0 0.0
    %714 = vmatpush1.msra.mxu0 0.0
    %715 = vmatprep.subr.mxu0 0.0
    %716 = vmatpush1.msra.mxu0 0.0
    %717 = vmatprep.subr.mxu0 0.0
    %718 = vmatpush1.msra.mxu0 0.0
    %719 = vmatprep.subr.mxu0 0.0
    %720 = vmatpush1.msra.mxu0 0.0
    %721 = vmatprep.subr.mxu0 0.0
    %722 = vmatpush1.msra.mxu0 0.0
    %723 = vmatprep.subr.mxu0 0.0
    %724 = vmatpush1.msra.mxu0 0.0
    %725 = vmatprep.subr.mxu0 0.0
    %726 = vmatpush1.msra.mxu0 0.0
    %727 = vmatprep.subr.mxu0 0.0
    %728 = vmatpush1.msra.mxu0 0.0
    %729 = vmatprep.subr.mxu0 0.0
    %730 = vmatpush1.msra.mxu0 0.0
    %731 = vmatprep.subr.mxu0 0.0
    %732 = vmatpush1.msra.mxu0 0.0
    %733 = vmatprep.subr.mxu0 0.0
    %734 = vmatpush1.msra.mxu0 0.0
    %735 = vmatprep.subr.mxu0 0.0
    %736 = vmatpush1.msra.mxu0 0.0
    %737 = vmatprep.subr.mxu0 0.0
    %738 = vmatpush1.msra.mxu0 0.0
    %739 = vmatprep.subr.mxu0 0.0
    %740 = vmatpush1.msra.mxu0 0.0
    %741 = vmatprep.subr.mxu0 0.0
    %742 = vmatpush1.msra.mxu0 0.0
    %743 = vmatprep.mubr.f32.mxu0 0.0
    %744 = vmatmul.mubr.f32.gmra.mrb[0].mxu0 %v678
    %v745 = vpop.f32.mrb[0].mxu0
    %v746 = vadd.f32 0.0, %v745
    %v747 = vpop.f32.mrb[0].mxu0
    %748 = vdwg.mxu0
    %v749 = vadd.f32 %v223, %v746
    %v750 = vtanh.pop %v749
    %751 = vmatprep.subr.mxu0 0.0
    %752 = vmatpush1.msra.mxu0 %v231
    %753 = vmatprep.subr.mxu0 0.0
    %754 = vmatpush1.msra.mxu0 %v232
    %755 = vmatprep.subr.mxu0 0.0
    %756 = vmatpush1.msra.mxu0 %v233
    %757 = vmatprep.subr.mxu0 0.0
    %758 = vmatpush1.msra.mxu0 %v234
    %759 = vmatprep.subr.mxu0 0.0
    %760 = vmatpush1.msra.mxu0 %v235
    %761 = vmatprep.subr.mxu0 0.0
    %762 = vmatpush1.msra.mxu0 %v236
    %763 = vmatprep.subr.mxu0 0.0
    %764 = vmatpush1.msra.mxu0 %v237
    %765 = vmatprep.subr.mxu0 0.0
    %766 = vmatpush1.msra.mxu0 %v238
    %767 = vmatprep.subr.mxu0 0.0
    %768 = vmatpush1.msra.mxu0 %v239
    %769 = vmatprep.subr.mxu0 0.0
    %770 = vmatpush1.msra.mxu0 %v240
    %771 = vmatprep.subr.mxu0 0.0
    %772 = vmatpush1.msra.mxu0 %v241
    %773 = vmatprep.subr.mxu0 0.0
    %774 = vmatpush1.msra.mxu0 %v242
    %775 = vmatprep.subr.mxu0 0.0
    %776 = vmatpush1.msra.mxu0 %v243
    %777 = vmatprep.subr.mxu0 0.0
    %778 = vmatpush1.msra.mxu0 %v244
    %779 = vmatprep.subr.mxu0 0.0
    %780 = vmatpush1.msra.mxu0 %v245
    %781 = vmatprep.subr.mxu0 0.0
    %782 = vmatpush1.msra.mxu0 %v246
    %783 = vmatprep.subr.mxu0 0.0
    %784 = vmatpush1.msra.mxu0 0.0
    %785 = vmatprep.subr.mxu0 0.0
    %786 = vmatpush1.msra.mxu0 0.0
    %787 = vmatprep.subr.mxu0 0.0
    %788 = vmatpush1.msra.mxu0 0.0
    %789 = vmatprep.subr.mxu0 0.0
    %790 = vmatpush1.msra.mxu0 0.0
    %791 = vmatprep.subr.mxu0 0.0
    %792 = vmatpush1.msra.mxu0 0.0
    %793 = vmatprep.subr.mxu0 0.0
    %794 = vmatpush1.msra.mxu0 0.0
    %795 = vmatprep.subr.mxu0 0.0
    %796 = vmatpush1.msra.mxu0 0.0
    %797 = vmatprep.subr.mxu0 0.0
    %798 = vmatpush1.msra.mxu0 0.0
    %799 = vmatprep.subr.mxu0 0.0
    %800 = vmatpush1.msra.mxu0 0.0
    %801 = vmatprep.subr.mxu0 0.0
    %802 = vmatpush1.msra.mxu0 0.0
    %803 = vmatprep.subr.mxu0 0.0
    %804 = vmatpush1.msra.mxu0 0.0
    %805 = vmatprep.subr.mxu0 0.0
    %806 = vmatpush1.msra.mxu0 0.0
    %807 = vmatprep.subr.mxu0 0.0
    %808 = vmatpush1.msra.mxu0 0.0
    %809 = vmatprep.subr.mxu0 0.0
    %810 = vmatpush1.msra.mxu0 0.0
    %811 = vmatprep.subr.mxu0 0.0
    %812 = vmatpush1.msra.mxu0 0.0
    %813 = vmatprep.subr.mxu0 0.0
    %814 = vmatpush1.msra.mxu0 0.0
    %815 = vmatprep.mubr.f32.mxu0 0.0
    %816 = vmatmul.mubr.f32.gmra.mrb[0].mxu0 %v750
    %v817 = vpop.f32.mrb[0].mxu0
    %v818 = vadd.f32 0.0, %v817
    %v819 = vpop.f32.mrb[0].mxu0
    %820 = vdwg.mxu0
    %v821 = vadd.f32 %v228, %v818
    %v822 = vtanh.pop %v821
    %v823 = vld [vmem:[#allocation7] sm:$0xff]
    %v824 = vld [vmem:[#allocation7 + $0x8] sm:$0xff]
    %v825 = vld [vmem:[#allocation7 + $0x10] sm:$0xff]
    %v826 = vld [vmem:[#allocation7 + $0x18] sm:$0xff]
    %v827 = vld [vmem:[#allocation7 + $0x20] sm:$0xff]
    %v828 = vld [vmem:[#allocation7 + $0x28] sm:$0xff]
    %v829 = vld [vmem:[#allocation7 + $0x30] sm:$0xff]
    %v830 = vld [vmem:[#allocation7 + $0x38] sm:$0xff]
    %v831 = vld [vmem:[#allocation7 + $0x40] sm:$0xff]
    %v832 = vld [vmem:[#allocation7 + $0x48] sm:$0xff]
    %v833 = vld [vmem:[#allocation7 + $0x50] sm:$0xff]
    %v834 = vld [vmem:[#allocation7 + $0x58] sm:$0xff]
    %v835 = vld [vmem:[#allocation7 + $0x60] sm:$0xff]
    %v836 = vld [vmem:[#allocation7 + $0x68] sm:$0xff]
    %v837 = vld [vmem:[#allocation7 + $0x70] sm:$0xff]
    %v838 = vld [vmem:[#allocation7 + $0x78] sm:$0xff]
    %s839 = scalar_lea.vmem %s4, 1
    %v840 = vld [vmem:[%s839] sm:$0x1]
    %v842 = vlaneseq
    %v843 = vshrl.u32 %v842, 7
    %v844 = vsub.s32 0, %v843
    %v845 = vrot.slane %v840, %v844
    %847 = vmatprep.subr.mxu0 0.0
    %848 = vmatpush1.msra.mxu0 %v823
    %849 = vmatprep.subr.mxu0 0.0
    %850 = vmatpush1.msra.mxu0 %v824
    %851 = vmatprep.subr.mxu0 0.0
    %852 = vmatpush1.msra.mxu0 %v825
    %853 = vmatprep.subr.mxu0 0.0
    %854 = vmatpush1.msra.mxu0 %v826
    %855 = vmatprep.subr.mxu0 0.0
    %856 = vmatpush1.msra.mxu0 %v827
    %857 = vmatprep.subr.mxu0 0.0
    %858 = vmatpush1.msra.mxu0 %v828
    %859 = vmatprep.subr.mxu0 0.0
    %860 = vmatpush1.msra.mxu0 %v829
    %861 = vmatprep.subr.mxu0 0.0
    %862 = vmatpush1.msra.mxu0 %v830
    %863 = vmatprep.subr.mxu0 0.0
    %864 = vmatpush1.msra.mxu0 %v831
    %865 = vmatprep.subr.mxu0 0.0
    %866 = vmatpush1.msra.mxu0 %v832
    %867 = vmatprep.subr.mxu0 0.0
    %868 = vmatpush1.msra.mxu0 %v833
    %869 = vmatprep.subr.mxu0 0.0
    %870 = vmatpush1.msra.mxu0 %v834
    %871 = vmatprep.subr.mxu0 0.0
    %872 = vmatpush1.msra.mxu0 %v835
    %873 = vmatprep.subr.mxu0 0.0
    %874 = vmatpush1.msra.mxu0 %v836
    %875 = vmatprep.subr.mxu0 0.0
    %876 = vmatpush1.msra.mxu0 %v837
    %877 = vmatprep.subr.mxu0 0.0
    %878 = vmatpush1.msra.mxu0 %v838
    %879 = vmatprep.subr.mxu0 0.0
    %880 = vmatpush1.msra.mxu0 0.0
    %881 = vmatprep.subr.mxu0 0.0
    %882 = vmatpush1.msra.mxu0 0.0
    %883 = vmatprep.subr.mxu0 0.0
    %884 = vmatpush1.msra.mxu0 0.0
    %885 = vmatprep.subr.mxu0 0.0
    %886 = vmatpush1.msra.mxu0 0.0
    %887 = vmatprep.subr.mxu0 0.0
    %888 = vmatpush1.msra.mxu0 0.0
    %889 = vmatprep.subr.mxu0 0.0
    %890 = vmatpush1.msra.mxu0 0.0
    %891 = vmatprep.subr.mxu0 0.0
    %892 = vmatpush1.msra.mxu0 0.0
    %893 = vmatprep.subr.mxu0 0.0
    %894 = vmatpush1.msra.mxu0 0.0
    %895 = vmatprep.subr.mxu0 0.0
    %896 = vmatpush1.msra.mxu0 0.0
    %897 = vmatprep.subr.mxu0 0.0
    %898 = vmatpush1.msra.mxu0 0.0
    %899 = vmatprep.subr.mxu0 0.0
    %900 = vmatpush1.msra.mxu0 0.0
    %901 = vmatprep.subr.mxu0 0.0
    %902 = vmatpush1.msra.mxu0 0.0
    %903 = vmatprep.subr.mxu0 0.0
    %904 = vmatpush1.msra.mxu0 0.0
    %905 = vmatprep.subr.mxu0 0.0
    %906 = vmatpush1.msra.mxu0 0.0
    %907 = vmatprep.subr.mxu0 0.0
    %908 = vmatpush1.msra.mxu0 0.0
    %909 = vmatprep.subr.mxu0 0.0
    %910 = vmatpush1.msra.mxu0 0.0
    %911 = vmatprep.mubr.f32.mxu0 0.0
    %912 = vmatmul.mubr.f32.gmra.mrb[0].mxu0 %v318
    %v913 = vpop.f32.mrb[0].mxu0
    %v914 = vadd.f32 %v845, %v913
    %v915 = vpop.f32.mrb[0].mxu0
    %916 = vmatprep.mubr.f32.mxu0 0.0
    %917 = vmatmul.mubr.f32.gmra.mrb[0].mxu0 %v390
    %v918 = vpop.f32.mrb[0].mxu0
    %v919 = vadd.f32 %v845, %v918
    %v920 = vpop.f32.mrb[0].mxu0
    %921 = vmatprep.mubr.f32.mxu0 0.0
    %922 = vmatmul.mubr.f32.gmra.mrb[0].mxu0 %v462
    %v923 = vpop.f32.mrb[0].mxu0
    %v924 = vadd.f32 %v845, %v923
    %v925 = vpop.f32.mrb[0].mxu0
    %926 = vmatprep.mubr.f32.mxu0 0.0
    %927 = vmatmul.mubr.f32.gmra.mrb[0].mxu0 %v534
    %v928 = vpop.f32.mrb[0].mxu0
    %v929 = vadd.f32 %v845, %v928
    %v930 = vpop.f32.mrb[0].mxu0
    %931 = vmatprep.mubr.f32.mxu0 0.0
    %932 = vmatmul.mubr.f32.gmra.mrb[0].mxu0 %v606
    %v933 = vpop.f32.mrb[0].mxu0
    %v934 = vadd.f32 %v845, %v933
    %v935 = vpop.f32.mrb[0].mxu0
    %936 = vmatprep.mubr.f32.mxu0 0.0
    %937 = vmatmul.mubr.f32.gmra.mrb[0].mxu0 %v678
    %v938 = vpop.f32.mrb[0].mxu0
    %v939 = vadd.f32 %v845, %v938
    %v940 = vpop.f32.mrb[0].mxu0
    %941 = vmatprep.mubr.f32.mxu0 0.0
    %942 = vmatmul.mubr.f32.gmra.mrb[0].mxu0 %v750
    %v943 = vpop.f32.mrb[0].mxu0
    %v944 = vadd.f32 %v845, %v943
    %v945 = vpop.f32.mrb[0].mxu0
    %946 = vmatprep.mubr.f32.mxu0 0.0
    %947 = vmatmul.mubr.f32.gmra.mrb[0].mxu0 %v822
    %v948 = vpop.f32.mrb[0].mxu0
    %v949 = vadd.f32 %v845, %v948
    %v950 = vpop.f32.mrb[0].mxu0
    %951 = vdwg.mxu0
    %s952 = scalar_lea.vmem [#allocation8], 128
    %v953 = vld [vmem:[%s952] sm:$0xff]
    %v954 = vld [vmem:[%s952 + $0x8] sm:$0xff]
    %v955 = vld [vmem:[%s952 + $0x10] sm:$0xff]
    %v956 = vld [vmem:[%s952 + $0x18] sm:$0xff]
    %v957 = vld [vmem:[%s952 + $0x20] sm:$0xff]
    %v958 = vld [vmem:[%s952 + $0x28] sm:$0xff]
    %v959 = vld [vmem:[%s952 + $0x30] sm:$0xff]
    %v960 = vld [vmem:[%s952 + $0x38] sm:$0xff]
    %v961 = vld [vmem:[%s952 + $0x40] sm:$0xff]
    %v962 = vld [vmem:[%s952 + $0x48] sm:$0xff]
    %v963 = vld [vmem:[%s952 + $0x50] sm:$0xff]
    %v964 = vld [vmem:[%s952 + $0x58] sm:$0xff]
    %v965 = vld [vmem:[%s952 + $0x60] sm:$0xff]
    %v966 = vld [vmem:[%s952 + $0x68] sm:$0xff]
    %v967 = vld [vmem:[%s952 + $0x70] sm:$0xff]
    %v968 = vld [vmem:[%s952 + $0x78] sm:$0xff]
    %969 = vmatprep.subr.mxu0 0.0
    %970 = vmatpush1.msra.mxu0 %v953
    %971 = vmatprep.subr.mxu0 0.0
    %972 = vmatpush1.msra.mxu0 %v954
    %973 = vmatprep.subr.mxu0 0.0
    %974 = vmatpush1.msra.mxu0 %v955
    %975 = vmatprep.subr.mxu0 0.0
    %976 = vmatpush1.msra.mxu0 %v956
    %977 = vmatprep.subr.mxu0 0.0
    %978 = vmatpush1.msra.mxu0 %v957
    %979 = vmatprep.subr.mxu0 0.0
    %980 = vmatpush1.msra.mxu0 %v958
    %981 = vmatprep.subr.mxu0 0.0
    %982 = vmatpush1.msra.mxu0 %v959
    %983 = vmatprep.subr.mxu0 0.0
    %984 = vmatpush1.msra.mxu0 %v960
    %985 = vmatprep.subr.mxu0 0.0
    %986 = vmatpush1.msra.mxu0 %v961
    %987 = vmatprep.subr.mxu0 0.0
    %988 = vmatpush1.msra.mxu0 %v962
    %989 = vmatprep.subr.mxu0 0.0
    %990 = vmatpush1.msra.mxu0 %v963
    %991 = vmatprep.subr.mxu0 0.0
    %992 = vmatpush1.msra.mxu0 %v964
    %993 = vmatprep.subr.mxu0 0.0
    %994 = vmatpush1.msra.mxu0 %v965
    %995 = vmatprep.subr.mxu0 0.0
    %996 = vmatpush1.msra.mxu0 %v966
    %997 = vmatprep.subr.mxu0 0.0
    %998 = vmatpush1.msra.mxu0 %v967
    %999 = vmatprep.subr.mxu0 0.0
    %1000 = vmatpush1.msra.mxu0 %v968
    %1001 = vmatprep.subr.mxu0 0.0
    %1002 = vmatpush1.msra.mxu0 0.0
    %1003 = vmatprep.subr.mxu0 0.0
    %1004 = vmatpush1.msra.mxu0 0.0
    %1005 = vmatprep.subr.mxu0 0.0
    %1006 = vmatpush1.msra.mxu0 0.0
    %1007 = vmatprep.subr.mxu0 0.0
    %1008 = vmatpush1.msra.mxu0 0.0
    %1009 = vmatprep.subr.mxu0 0.0
    %1010 = vmatpush1.msra.mxu0 0.0
    %1011 = vmatprep.subr.mxu0 0.0
    %1012 = vmatpush1.msra.mxu0 0.0
    %1013 = vmatprep.subr.mxu0 0.0
    %1014 = vmatpush1.msra.mxu0 0.0
    %1015 = vmatprep.subr.mxu0 0.0
    %1016 = vmatpush1.msra.mxu0 0.0
    %1017 = vmatprep.subr.mxu0 0.0
    %1018 = vmatpush1.msra.mxu0 0.0
    %1019 = vmatprep.subr.mxu0 0.0
    %1020 = vmatpush1.msra.mxu0 0.0
    %1021 = vmatprep.subr.mxu0 0.0
    %1022 = vmatpush1.msra.mxu0 0.0
    %1023 = vmatprep.subr.mxu0 0.0
    %1024 = vmatpush1.msra.mxu0 0.0
    %1025 = vmatprep.subr.mxu0 0.0
    %1026 = vmatpush1.msra.mxu0 0.0
    %1027 = vmatprep.subr.mxu0 0.0
    %1028 = vmatpush1.msra.mxu0 0.0
    %1029 = vmatprep.subr.mxu0 0.0
    %1030 = vmatpush1.msra.mxu0 0.0
    %1031 = vmatprep.subr.mxu0 0.0
    %1032 = vmatpush1.msra.mxu0 0.0
    %1033 = vmatprep.mubr.f32.mxu0 0.0
    %1034 = vmatmul.mubr.f32.gmra.mrb[0].mxu0 0.0
    %v1035 = vpop.f32.mrb[0].mxu0
    %v1036 = vadd.f32 0.0, %v1035
    %v1037 = vpop.f32.mrb[0].mxu0
    %1038 = vdwg.mxu0
    %v1039 = vadd.f32 %v914, %v1036
    %v1040 = vtanh.pop %v1039
    %1041 = vmatprep.subr.mxu0 0.0
    %1042 = vmatpush1.msra.mxu0 %v953
    %1043 = vmatprep.subr.mxu0 0.0
    %1044 = vmatpush1.msra.mxu0 %v954
    %1045 = vmatprep.subr.mxu0 0.0
    %1046 = vmatpush1.msra.mxu0 %v955
    %1047 = vmatprep.subr.mxu0 0.0
    %1048 = vmatpush1.msra.mxu0 %v956
    %1049 = vmatprep.subr.mxu0 0.0
    %1050 = vmatpush1.msra.mxu0 %v957
    %1051 = vmatprep.subr.mxu0 0.0
    %1052 = vmatpush1.msra.mxu0 %v958
    %1053 = vmatprep.subr.mxu0 0.0
    %1054 = vmatpush1.msra.mxu0 %v959
    %1055 = vmatprep.subr.mxu0 0.0
    %1056 = vmatpush1.msra.mxu0 %v960
    %1057 = vmatprep.subr.mxu0 0.0
    %1058 = vmatpush1.msra.mxu0 %v961
    %1059 = vmatprep.subr.mxu0 0.0
    %1060 = vmatpush1.msra.mxu0 %v962
    %1061 = vmatprep.subr.mxu0 0.0
    %1062 = vmatpush1.msra.mxu0 %v963
    %1063 = vmatprep.subr.mxu0 0.0
    %1064 = vmatpush1.msra.mxu0 %v964
    %1065 = vmatprep.subr.mxu0 0.0
    %1066 = vmatpush1.msra.mxu0 %v965
    %1067 = vmatprep.subr.mxu0 0.0
    %1068 = vmatpush1.msra.mxu0 %v966
    %1069 = vmatprep.subr.mxu0 0.0
    %1070 = vmatpush1.msra.mxu0 %v967
    %1071 = vmatprep.subr.mxu0 0.0
    %1072 = vmatpush1.msra.mxu0 %v968
    %1073 = vmatprep.subr.mxu0 0.0
    %1074 = vmatpush1.msra.mxu0 0.0
    %1075 = vmatprep.subr.mxu0 0.0
    %1076 = vmatpush1.msra.mxu0 0.0
    %1077 = vmatprep.subr.mxu0 0.0
    %1078 = vmatpush1.msra.mxu0 0.0
    %1079 = vmatprep.subr.mxu0 0.0
    %1080 = vmatpush1.msra.mxu0 0.0
    %1081 = vmatprep.subr.mxu0 0.0
    %1082 = vmatpush1.msra.mxu0 0.0
    %1083 = vmatprep.subr.mxu0 0.0
    %1084 = vmatpush1.msra.mxu0 0.0
    %1085 = vmatprep.subr.mxu0 0.0
    %1086 = vmatpush1.msra.mxu0 0.0
    %1087 = vmatprep.subr.mxu0 0.0
    %1088 = vmatpush1.msra.mxu0 0.0
    %1089 = vmatprep.subr.mxu0 0.0
    %1090 = vmatpush1.msra.mxu0 0.0
    %1091 = vmatprep.subr.mxu0 0.0
    %1092 = vmatpush1.msra.mxu0 0.0
    %1093 = vmatprep.subr.mxu0 0.0
    %1094 = vmatpush1.msra.mxu0 0.0
    %1095 = vmatprep.subr.mxu0 0.0
    %1096 = vmatpush1.msra.mxu0 0.0
    %1097 = vmatprep.subr.mxu0 0.0
    %1098 = vmatpush1.msra.mxu0 0.0
    %1099 = vmatprep.subr.mxu0 0.0
    %1100 = vmatpush1.msra.mxu0 0.0
    %1101 = vmatprep.subr.mxu0 0.0
    %1102 = vmatpush1.msra.mxu0 0.0
    %1103 = vmatprep.subr.mxu0 0.0
    %1104 = vmatpush1.msra.mxu0 0.0
    %1105 = vmatprep.mubr.f32.mxu0 0.0
    %1106 = vmatmul.mubr.f32.gmra.mrb[0].mxu0 %v1040
    %v1107 = vpop.f32.mrb[0].mxu0
    %v1108 = vadd.f32 0.0, %v1107
    %v1109 = vpop.f32.mrb[0].mxu0
    %1110 = vdwg.mxu0
    %v1111 = vadd.f32 %v919, %v1108
    %v1112 = vtanh.pop %v1111
    %1113 = vmatprep.subr.mxu0 0.0
    %1114 = vmatpush1.msra.mxu0 %v953
    %1115 = vmatprep.subr.mxu0 0.0
    %1116 = vmatpush1.msra.mxu0 %v954
    %1117 = vmatprep.subr.mxu0 0.0
    %1118 = vmatpush1.msra.mxu0 %v955
    %1119 = vmatprep.subr.mxu0 0.0
    %1120 = vmatpush1.msra.mxu0 %v956
    %1121 = vmatprep.subr.mxu0 0.0
    %1122 = vmatpush1.msra.mxu0 %v957
    %1123 = vmatprep.subr.mxu0 0.0
    %1124 = vmatpush1.msra.mxu0 %v958
    %1125 = vmatprep.subr.mxu0 0.0
    %1126 = vmatpush1.msra.mxu0 %v959
    %1127 = vmatprep.subr.mxu0 0.0
    %1128 = vmatpush1.msra.mxu0 %v960
    %1129 = vmatprep.subr.mxu0 0.0
    %1130 = vmatpush1.msra.mxu0 %v961
    %1131 = vmatprep.subr.mxu0 0.0
    %1132 = vmatpush1.msra.mxu0 %v962
    %1133 = vmatprep.subr.mxu0 0.0
    %1134 = vmatpush1.msra.mxu0 %v963
    %1135 = vmatprep.subr.mxu0 0.0
    %1136 = vmatpush1.msra.mxu0 %v964
    %1137 = vmatprep.subr.mxu0 0.0
    %1138 = vmatpush1.msra.mxu0 %v965
    %1139 = vmatprep.subr.mxu0 0.0
    %1140 = vmatpush1.msra.mxu0 %v966
    %1141 = vmatprep.subr.mxu0 0.0
    %1142 = vmatpush1.msra.mxu0 %v967
    %1143 = vmatprep.subr.mxu0 0.0
    %1144 = vmatpush1.msra.mxu0 %v968
    %1145 = vmatprep.subr.mxu0 0.0
    %1146 = vmatpush1.msra.mxu0 0.0
    %1147 = vmatprep.subr.mxu0 0.0
    %1148 = vmatpush1.msra.mxu0 0.0
    %1149 = vmatprep.subr.mxu0 0.0
    %1150 = vmatpush1.msra.mxu0 0.0
    %1151 = vmatprep.subr.mxu0 0.0
    %1152 = vmatpush1.msra.mxu0 0.0
    %1153 = vmatprep.subr.mxu0 0.0
    %1154 = vmatpush1.msra.mxu0 0.0
    %1155 = vmatprep.subr.mxu0 0.0
    %1156 = vmatpush1.msra.mxu0 0.0
    %1157 = vmatprep.subr.mxu0 0.0
    %1158 = vmatpush1.msra.mxu0 0.0
    %1159 = vmatprep.subr.mxu0 0.0
    %1160 = vmatpush1.msra.mxu0 0.0
    %1161 = vmatprep.subr.mxu0 0.0
    %1162 = vmatpush1.msra.mxu0 0.0
    %1163 = vmatprep.subr.mxu0 0.0
    %1164 = vmatpush1.msra.mxu0 0.0
    %1165 = vmatprep.subr.mxu0 0.0
    %1166 = vmatpush1.msra.mxu0 0.0
    %1167 = vmatprep.subr.mxu0 0.0
    %1168 = vmatpush1.msra.mxu0 0.0
    %1169 = vmatprep.subr.mxu0 0.0
    %1170 = vmatpush1.msra.mxu0 0.0
    %1171 = vmatprep.subr.mxu0 0.0
    %1172 = vmatpush1.msra.mxu0 0.0
    %1173 = vmatprep.subr.mxu0 0.0
    %1174 = vmatpush1.msra.mxu0 0.0
    %1175 = vmatprep.subr.mxu0 0.0
    %1176 = vmatpush1.msra.mxu0 0.0
    %1177 = vmatprep.mubr.f32.mxu0 0.0
    %1178 = vmatmul.mubr.f32.gmra.mrb[0].mxu0 %v1112
    %v1179 = vpop.f32.mrb[0].mxu0
    %v1180 = vadd.f32 0.0, %v1179
    %v1181 = vpop.f32.mrb[0].mxu0
    %1182 = vdwg.mxu0
    %v1183 = vadd.f32 %v924, %v1180
    %v1184 = vtanh.pop %v1183
    %1185 = vmatprep.subr.mxu0 0.0
    %1186 = vmatpush1.msra.mxu0 %v953
    %1187 = vmatprep.subr.mxu0 0.0
    %1188 = vmatpush1.msra.mxu0 %v954
    %1189 = vmatprep.subr.mxu0 0.0
    %1190 = vmatpush1.msra.mxu0 %v955
    %1191 = vmatprep.subr.mxu0 0.0
    %1192 = vmatpush1.msra.mxu0 %v956
    %1193 = vmatprep.subr.mxu0 0.0
    %1194 = vmatpush1.msra.mxu0 %v957
    %1195 = vmatprep.subr.mxu0 0.0
    %1196 = vmatpush1.msra.mxu0 %v958
    %1197 = vmatprep.subr.mxu0 0.0
    %1198 = vmatpush1.msra.mxu0 %v959
    %1199 = vmatprep.subr.mxu0 0.0
    %1200 = vmatpush1.msra.mxu0 %v960
    %1201 = vmatprep.subr.mxu0 0.0
    %1202 = vmatpush1.msra.mxu0 %v961
    %1203 = vmatprep.subr.mxu0 0.0
    %1204 = vmatpush1.msra.mxu0 %v962
    %1205 = vmatprep.subr.mxu0 0.0
    %1206 = vmatpush1.msra.mxu0 %v963
    %1207 = vmatprep.subr.mxu0 0.0
    %1208 = vmatpush1.msra.mxu0 %v964
    %1209 = vmatprep.subr.mxu0 0.0
    %1210 = vmatpush1.msra.mxu0 %v965
    %1211 = vmatprep.subr.mxu0 0.0
    %1212 = vmatpush1.msra.mxu0 %v966
    %1213 = vmatprep.subr.mxu0 0.0
    %1214 = vmatpush1.msra.mxu0 %v967
    %1215 = vmatprep.subr.mxu0 0.0
    %1216 = vmatpush1.msra.mxu0 %v968
    %1217 = vmatprep.subr.mxu0 0.0
    %1218 = vmatpush1.msra.mxu0 0.0
    %1219 = vmatprep.subr.mxu0 0.0
    %1220 = vmatpush1.msra.mxu0 0.0
    %1221 = vmatprep.subr.mxu0 0.0
    %1222 = vmatpush1.msra.mxu0 0.0
    %1223 = vmatprep.subr.mxu0 0.0
    %1224 = vmatpush1.msra.mxu0 0.0
    %1225 = vmatprep.subr.mxu0 0.0
    %1226 = vmatpush1.msra.mxu0 0.0
    %1227 = vmatprep.subr.mxu0 0.0
    %1228 = vmatpush1.msra.mxu0 0.0
    %1229 = vmatprep.subr.mxu0 0.0
    %1230 = vmatpush1.msra.mxu0 0.0
    %1231 = vmatprep.subr.mxu0 0.0
    %1232 = vmatpush1.msra.mxu0 0.0
    %1233 = vmatprep.subr.mxu0 0.0
    %1234 = vmatpush1.msra.mxu0 0.0
    %1235 = vmatprep.subr.mxu0 0.0
    %1236 = vmatpush1.msra.mxu0 0.0
    %1237 = vmatprep.subr.mxu0 0.0
    %1238 = vmatpush1.msra.mxu0 0.0
    %1239 = vmatprep.subr.mxu0 0.0
    %1240 = vmatpush1.msra.mxu0 0.0
    %1241 = vmatprep.subr.mxu0 0.0
    %1242 = vmatpush1.msra.mxu0 0.0
    %1243 = vmatprep.subr.mxu0 0.0
    %1244 = vmatpush1.msra.mxu0 0.0
    %1245 = vmatprep.subr.mxu0 0.0
    %1246 = vmatpush1.msra.mxu0 0.0
    %1247 = vmatprep.subr.mxu0 0.0
    %1248 = vmatpush1.msra.mxu0 0.0
    %1249 = vmatprep.mubr.f32.mxu0 0.0
    %1250 = vmatmul.mubr.f32.gmra.mrb[0].mxu0 %v1184
    %v1251 = vpop.f32.mrb[0].mxu0
    %v1252 = vadd.f32 0.0, %v1251
    %v1253 = vpop.f32.mrb[0].mxu0
    %1254 = vdwg.mxu0
    %v1255 = vadd.f32 %v929, %v1252
    %v1256 = vtanh.pop %v1255
    %1257 = vmatprep.subr.mxu0 0.0
    %1258 = vmatpush1.msra.mxu0 %v953
    %1259 = vmatprep.subr.mxu0 0.0
    %1260 = vmatpush1.msra.mxu0 %v954
    %1261 = vmatprep.subr.mxu0 0.0
    %1262 = vmatpush1.msra.mxu0 %v955
    %1263 = vmatprep.subr.mxu0 0.0
    %1264 = vmatpush1.msra.mxu0 %v956
    %1265 = vmatprep.subr.mxu0 0.0
    %1266 = vmatpush1.msra.mxu0 %v957
    %1267 = vmatprep.subr.mxu0 0.0
    %1268 = vmatpush1.msra.mxu0 %v958
    %1269 = vmatprep.subr.mxu0 0.0
    %1270 = vmatpush1.msra.mxu0 %v959
    %1271 = vmatprep.subr.mxu0 0.0
    %1272 = vmatpush1.msra.mxu0 %v960
    %1273 = vmatprep.subr.mxu0 0.0
    %1274 = vmatpush1.msra.mxu0 %v961
    %1275 = vmatprep.subr.mxu0 0.0
    %1276 = vmatpush1.msra.mxu0 %v962
    %1277 = vmatprep.subr.mxu0 0.0
    %1278 = vmatpush1.msra.mxu0 %v963
    %1279 = vmatprep.subr.mxu0 0.0
    %1280 = vmatpush1.msra.mxu0 %v964
    %1281 = vmatprep.subr.mxu0 0.0
    %1282 = vmatpush1.msra.mxu0 %v965
    %1283 = vmatprep.subr.mxu0 0.0
    %1284 = vmatpush1.msra.mxu0 %v966
    %1285 = vmatprep.subr.mxu0 0.0
    %1286 = vmatpush1.msra.mxu0 %v967
    %1287 = vmatprep.subr.mxu0 0.0
    %1288 = vmatpush1.msra.mxu0 %v968
    %1289 = vmatprep.subr.mxu0 0.0
    %1290 = vmatpush1.msra.mxu0 0.0
    %1291 = vmatprep.subr.mxu0 0.0
    %1292 = vmatpush1.msra.mxu0 0.0
    %1293 = vmatprep.subr.mxu0 0.0
    %1294 = vmatpush1.msra.mxu0 0.0
    %1295 = vmatprep.subr.mxu0 0.0
    %1296 = vmatpush1.msra.mxu0 0.0
    %1297 = vmatprep.subr.mxu0 0.0
    %1298 = vmatpush1.msra.mxu0 0.0
    %1299 = vmatprep.subr.mxu0 0.0
    %1300 = vmatpush1.msra.mxu0 0.0
    %1301 = vmatprep.subr.mxu0 0.0
    %1302 = vmatpush1.msra.mxu0 0.0
    %1303 = vmatprep.subr.mxu0 0.0
    %1304 = vmatpush1.msra.mxu0 0.0
    %1305 = vmatprep.subr.mxu0 0.0
    %1306 = vmatpush1.msra.mxu0 0.0
    %1307 = vmatprep.subr.mxu0 0.0
    %1308 = vmatpush1.msra.mxu0 0.0
    %1309 = vmatprep.subr.mxu0 0.0
    %1310 = vmatpush1.msra.mxu0 0.0
    %1311 = vmatprep.subr.mxu0 0.0
    %1312 = vmatpush1.msra.mxu0 0.0
    %1313 = vmatprep.subr.mxu0 0.0
    %1314 = vmatpush1.msra.mxu0 0.0
    %1315 = vmatprep.subr.mxu0 0.0
    %1316 = vmatpush1.msra.mxu0 0.0
    %1317 = vmatprep.subr.mxu0 0.0
    %1318 = vmatpush1.msra.mxu0 0.0
    %1319 = vmatprep.subr.mxu0 0.0
    %1320 = vmatpush1.msra.mxu0 0.0
    %1321 = vmatprep.mubr.f32.mxu0 0.0
    %1322 = vmatmul.mubr.f32.gmra.mrb[0].mxu0 %v1256
    %v1323 = vpop.f32.mrb[0].mxu0
    %v1324 = vadd.f32 0.0, %v1323
    %v1325 = vpop.f32.mrb[0].mxu0
    %1326 = vdwg.mxu0
    %v1327 = vadd.f32 %v934, %v1324
    %v1328 = vtanh.pop %v1327
    %1329 = vmatprep.subr.mxu0 0.0
    %1330 = vmatpush1.msra.mxu0 %v953
    %1331 = vmatprep.subr.mxu0 0.0
    %1332 = vmatpush1.msra.mxu0 %v954
    %1333 = vmatprep.subr.mxu0 0.0
    %1334 = vmatpush1.msra.mxu0 %v955
    %1335 = vmatprep.subr.mxu0 0.0
    %1336 = vmatpush1.msra.mxu0 %v956
    %1337 = vmatprep.subr.mxu0 0.0
    %1338 = vmatpush1.msra.mxu0 %v957
    %1339 = vmatprep.subr.mxu0 0.0
    %1340 = vmatpush1.msra.mxu0 %v958
    %1341 = vmatprep.subr.mxu0 0.0
    %1342 = vmatpush1.msra.mxu0 %v959
    %1343 = vmatprep.subr.mxu0 0.0
    %1344 = vmatpush1.msra.mxu0 %v960
    %1345 = vmatprep.subr.mxu0 0.0
    %1346 = vmatpush1.msra.mxu0 %v961
    %1347 = vmatprep.subr.mxu0 0.0
    %1348 = vmatpush1.msra.mxu0 %v962
    %1349 = vmatprep.subr.mxu0 0.0
    %1350 = vmatpush1.msra.mxu0 %v963
    %1351 = vmatprep.subr.mxu0 0.0
    %1352 = vmatpush1.msra.mxu0 %v964
    %1353 = vmatprep.subr.mxu0 0.0
    %1354 = vmatpush1.msra.mxu0 %v965
    %1355 = vmatprep.subr.mxu0 0.0
    %1356 = vmatpush1.msra.mxu0 %v966
    %1357 = vmatprep.subr.mxu0 0.0
    %1358 = vmatpush1.msra.mxu0 %v967
    %1359 = vmatprep.subr.mxu0 0.0
    %1360 = vmatpush1.msra.mxu0 %v968
    %1361 = vmatprep.subr.mxu0 0.0
    %1362 = vmatpush1.msra.mxu0 0.0
    %1363 = vmatprep.subr.mxu0 0.0
    %1364 = vmatpush1.msra.mxu0 0.0
    %1365 = vmatprep.subr.mxu0 0.0
    %1366 = vmatpush1.msra.mxu0 0.0
    %1367 = vmatprep.subr.mxu0 0.0
    %1368 = vmatpush1.msra.mxu0 0.0
    %1369 = vmatprep.subr.mxu0 0.0
    %1370 = vmatpush1.msra.mxu0 0.0
    %1371 = vmatprep.subr.mxu0 0.0
    %1372 = vmatpush1.msra.mxu0 0.0
    %1373 = vmatprep.subr.mxu0 0.0
    %1374 = vmatpush1.msra.mxu0 0.0
    %1375 = vmatprep.subr.mxu0 0.0
    %1376 = vmatpush1.msra.mxu0 0.0
    %1377 = vmatprep.subr.mxu0 0.0
    %1378 = vmatpush1.msra.mxu0 0.0
    %1379 = vmatprep.subr.mxu0 0.0
    %1380 = vmatpush1.msra.mxu0 0.0
    %1381 = vmatprep.subr.mxu0 0.0
    %1382 = vmatpush1.msra.mxu0 0.0
    %1383 = vmatprep.subr.mxu0 0.0
    %1384 = vmatpush1.msra.mxu0 0.0
    %1385 = vmatprep.subr.mxu0 0.0
    %1386 = vmatpush1.msra.mxu0 0.0
    %1387 = vmatprep.subr.mxu0 0.0
    %1388 = vmatpush1.msra.mxu0 0.0
    %1389 = vmatprep.subr.mxu0 0.0
    %1390 = vmatpush1.msra.mxu0 0.0
    %1391 = vmatprep.subr.mxu0 0.0
    %1392 = vmatpush1.msra.mxu0 0.0
    %1393 = vmatprep.mubr.f32.mxu0 0.0
    %1394 = vmatmul.mubr.f32.gmra.mrb[0].mxu0 %v1328
    %v1395 = vpop.f32.mrb[0].mxu0
    %v1396 = vadd.f32 0.0, %v1395
    %v1397 = vpop.f32.mrb[0].mxu0
    %1398 = vdwg.mxu0
    %v1399 = vadd.f32 %v939, %v1396
    %v1400 = vtanh.pop %v1399
    %1401 = vmatprep.subr.mxu0 0.0
    %1402 = vmatpush1.msra.mxu0 %v953
    %1403 = vmatprep.subr.mxu0 0.0
    %1404 = vmatpush1.msra.mxu0 %v954
    %1405 = vmatprep.subr.mxu0 0.0
    %1406 = vmatpush1.msra.mxu0 %v955
    %1407 = vmatprep.subr.mxu0 0.0
    %1408 = vmatpush1.msra.mxu0 %v956
    %1409 = vmatprep.subr.mxu0 0.0
    %1410 = vmatpush1.msra.mxu0 %v957
    %1411 = vmatprep.subr.mxu0 0.0
    %1412 = vmatpush1.msra.mxu0 %v958
    %1413 = vmatprep.subr.mxu0 0.0
    %1414 = vmatpush1.msra.mxu0 %v959
    %1415 = vmatprep.subr.mxu0 0.0
    %1416 = vmatpush1.msra.mxu0 %v960
    %1417 = vmatprep.subr.mxu0 0.0
    %1418 = vmatpush1.msra.mxu0 %v961
    %1419 = vmatprep.subr.mxu0 0.0
    %1420 = vmatpush1.msra.mxu0 %v962
    %1421 = vmatprep.subr.mxu0 0.0
    %1422 = vmatpush1.msra.mxu0 %v963
    %1423 = vmatprep.subr.mxu0 0.0
    %1424 = vmatpush1.msra.mxu0 %v964
    %1425 = vmatprep.subr.mxu0 0.0
    %1426 = vmatpush1.msra.mxu0 %v965
    %1427 = vmatprep.subr.mxu0 0.0
    %1428 = vmatpush1.msra.mxu0 %v966
    %1429 = vmatprep.subr.mxu0 0.0
    %1430 = vmatpush1.msra.mxu0 %v967
    %1431 = vmatprep.subr.mxu0 0.0
    %1432 = vmatpush1.msra.mxu0 %v968
    %1433 = vmatprep.subr.mxu0 0.0
    %1434 = vmatpush1.msra.mxu0 0.0
    %1435 = vmatprep.subr.mxu0 0.0
    %1436 = vmatpush1.msra.mxu0 0.0
    %1437 = vmatprep.subr.mxu0 0.0
    %1438 = vmatpush1.msra.mxu0 0.0
    %1439 = vmatprep.subr.mxu0 0.0
    %1440 = vmatpush1.msra.mxu0 0.0
    %1441 = vmatprep.subr.mxu0 0.0
    %1442 = vmatpush1.msra.mxu0 0.0
    %1443 = vmatprep.subr.mxu0 0.0
    %1444 = vmatpush1.msra.mxu0 0.0
    %1445 = vmatprep.subr.mxu0 0.0
    %1446 = vmatpush1.msra.mxu0 0.0
    %1447 = vmatprep.subr.mxu0 0.0
    %1448 = vmatpush1.msra.mxu0 0.0
    %1449 = vmatprep.subr.mxu0 0.0
    %1450 = vmatpush1.msra.mxu0 0.0
    %1451 = vmatprep.subr.mxu0 0.0
    %1452 = vmatpush1.msra.mxu0 0.0
    %1453 = vmatprep.subr.mxu0 0.0
    %1454 = vmatpush1.msra.mxu0 0.0
    %1455 = vmatprep.subr.mxu0 0.0
    %1456 = vmatpush1.msra.mxu0 0.0
    %1457 = vmatprep.subr.mxu0 0.0
    %1458 = vmatpush1.msra.mxu0 0.0
    %1459 = vmatprep.subr.mxu0 0.0
    %1460 = vmatpush1.msra.mxu0 0.0
    %1461 = vmatprep.subr.mxu0 0.0
    %1462 = vmatpush1.msra.mxu0 0.0
    %1463 = vmatprep.subr.mxu0 0.0
    %1464 = vmatpush1.msra.mxu0 0.0
    %1465 = vmatprep.mubr.f32.mxu0 0.0
    %1466 = vmatmul.mubr.f32.gmra.mrb[0].mxu0 %v1400
    %v1467 = vpop.f32.mrb[0].mxu0
    %v1468 = vadd.f32 0.0, %v1467
    %v1469 = vpop.f32.mrb[0].mxu0
    %1470 = vdwg.mxu0
    %v1471 = vadd.f32 %v944, %v1468
    %v1472 = vtanh.pop %v1471
    %1473 = vmatprep.subr.mxu0 0.0
    %1474 = vmatpush1.msra.mxu0 %v953
    %1475 = vmatprep.subr.mxu0 0.0
    %1476 = vmatpush1.msra.mxu0 %v954
    %1477 = vmatprep.subr.mxu0 0.0
    %1478 = vmatpush1.msra.mxu0 %v955
    %1479 = vmatprep.subr.mxu0 0.0
    %1480 = vmatpush1.msra.mxu0 %v956
    %1481 = vmatprep.subr.mxu0 0.0
    %1482 = vmatpush1.msra.mxu0 %v957
    %1483 = vmatprep.subr.mxu0 0.0
    %1484 = vmatpush1.msra.mxu0 %v958
    %1485 = vmatprep.subr.mxu0 0.0
    %1486 = vmatpush1.msra.mxu0 %v959
    %1487 = vmatprep.subr.mxu0 0.0
    %1488 = vmatpush1.msra.mxu0 %v960
    %1489 = vmatprep.subr.mxu0 0.0
    %1490 = vmatpush1.msra.mxu0 %v961
    %1491 = vmatprep.subr.mxu0 0.0
    %1492 = vmatpush1.msra.mxu0 %v962
    %1493 = vmatprep.subr.mxu0 0.0
    %1494 = vmatpush1.msra.mxu0 %v963
    %1495 = vmatprep.subr.mxu0 0.0
    %1496 = vmatpush1.msra.mxu0 %v964
    %1497 = vmatprep.subr.mxu0 0.0
    %1498 = vmatpush1.msra.mxu0 %v965
    %1499 = vmatprep.subr.mxu0 0.0
    %1500 = vmatpush1.msra.mxu0 %v966
    %1501 = vmatprep.subr.mxu0 0.0
    %1502 = vmatpush1.msra.mxu0 %v967
    %1503 = vmatprep.subr.mxu0 0.0
    %1504 = vmatpush1.msra.mxu0 %v968
    %1505 = vmatprep.subr.mxu0 0.0
    %1506 = vmatpush1.msra.mxu0 0.0
    %1507 = vmatprep.subr.mxu0 0.0
    %1508 = vmatpush1.msra.mxu0 0.0
    %1509 = vmatprep.subr.mxu0 0.0
    %1510 = vmatpush1.msra.mxu0 0.0
    %1511 = vmatprep.subr.mxu0 0.0
    %1512 = vmatpush1.msra.mxu0 0.0
    %1513 = vmatprep.subr.mxu0 0.0
    %1514 = vmatpush1.msra.mxu0 0.0
    %1515 = vmatprep.subr.mxu0 0.0
    %1516 = vmatpush1.msra.mxu0 0.0
    %1517 = vmatprep.subr.mxu0 0.0
    %1518 = vmatpush1.msra.mxu0 0.0
    %1519 = vmatprep.subr.mxu0 0.0
    %1520 = vmatpush1.msra.mxu0 0.0
    %1521 = vmatprep.subr.mxu0 0.0
    %1522 = vmatpush1.msra.mxu0 0.0
    %1523 = vmatprep.subr.mxu0 0.0
    %1524 = vmatpush1.msra.mxu0 0.0
    %1525 = vmatprep.subr.mxu0 0.0
    %1526 = vmatpush1.msra.mxu0 0.0
    %1527 = vmatprep.subr.mxu0 0.0
    %1528 = vmatpush1.msra.mxu0 0.0
    %1529 = vmatprep.subr.mxu0 0.0
    %1530 = vmatpush1.msra.mxu0 0.0
    %1531 = vmatprep.subr.mxu0 0.0
    %1532 = vmatpush1.msra.mxu0 0.0
    %1533 = vmatprep.subr.mxu0 0.0
    %1534 = vmatpush1.msra.mxu0 0.0
    %1535 = vmatprep.subr.mxu0 0.0
    %1536 = vmatpush1.msra.mxu0 0.0
    %1537 = vmatprep.mubr.f32.mxu0 0.0
    %1538 = vmatmul.mubr.f32.gmra.mrb[0].mxu0 %v1472
    %v1539 = vpop.f32.mrb[0].mxu0
    %v1540 = vadd.f32 0.0, %v1539
    %v1541 = vpop.f32.mrb[0].mxu0
    %1542 = vdwg.mxu0
    %v1543 = vadd.f32 %v949, %v1540
    %v1544 = vtanh.pop %v1543
    %v1545 = vld [vmem:[#allocation10] sm:$0xff]
    %v1546 = vld [vmem:[#allocation10 + $0x8] sm:$0xff]
    %v1547 = vld [vmem:[#allocation10 + $0x10] sm:$0xff]
    %v1548 = vld [vmem:[#allocation10 + $0x18] sm:$0xff]
    %v1549 = vld [vmem:[#allocation10 + $0x20] sm:$0xff]
    %v1550 = vld [vmem:[#allocation10 + $0x28] sm:$0xff]
    %v1551 = vld [vmem:[#allocation10 + $0x30] sm:$0xff]
    %v1552 = vld [vmem:[#allocation10 + $0x38] sm:$0xff]
    %v1553 = vld [vmem:[#allocation10 + $0x40] sm:$0xff]
    %v1554 = vld [vmem:[#allocation10 + $0x48] sm:$0xff]
    %v1555 = vld [vmem:[#allocation10 + $0x50] sm:$0xff]
    %v1556 = vld [vmem:[#allocation10 + $0x58] sm:$0xff]
    %v1557 = vld [vmem:[#allocation10 + $0x60] sm:$0xff]
    %v1558 = vld [vmem:[#allocation10 + $0x68] sm:$0xff]
    %v1559 = vld [vmem:[#allocation10 + $0x70] sm:$0xff]
    %v1560 = vld [vmem:[#allocation10 + $0x78] sm:$0xff]
    %v1561 = vld [vmem:[%s6] sm:$0x1]
    %v1563 = vlaneseq
    %v1564 = vshrl.u32 %v1563, 7
    %v1565 = vsub.s32 0, %v1564
    %v1566 = vrot.slane %v1561, %v1565
    %1568 = vmatprep.subr.mxu0 0.0
    %1569 = vmatpush1.msra.mxu0 %v1545
    %1570 = vmatprep.subr.mxu0 0.0
    %1571 = vmatpush1.msra.mxu0 %v1546
    %1572 = vmatprep.subr.mxu0 0.0
    %1573 = vmatpush1.msra.mxu0 %v1547
    %1574 = vmatprep.subr.mxu0 0.0
    %1575 = vmatpush1.msra.mxu0 %v1548
    %1576 = vmatprep.subr.mxu0 0.0
    %1577 = vmatpush1.msra.mxu0 %v1549
    %1578 = vmatprep.subr.mxu0 0.0
    %1579 = vmatpush1.msra.mxu0 %v1550
    %1580 = vmatprep.subr.mxu0 0.0
    %1581 = vmatpush1.msra.mxu0 %v1551
    %1582 = vmatprep.subr.mxu0 0.0
    %1583 = vmatpush1.msra.mxu0 %v1552
    %1584 = vmatprep.subr.mxu0 0.0
    %1585 = vmatpush1.msra.mxu0 %v1553
    %1586 = vmatprep.subr.mxu0 0.0
    %1587 = vmatpush1.msra.mxu0 %v1554
    %1588 = vmatprep.subr.mxu0 0.0
    %1589 = vmatpush1.msra.mxu0 %v1555
    %1590 = vmatprep.subr.mxu0 0.0
    %1591 = vmatpush1.msra.mxu0 %v1556
    %1592 = vmatprep.subr.mxu0 0.0
    %1593 = vmatpush1.msra.mxu0 %v1557
    %1594 = vmatprep.subr.mxu0 0.0
    %1595 = vmatpush1.msra.mxu0 %v1558
    %1596 = vmatprep.subr.mxu0 0.0
    %1597 = vmatpush1.msra.mxu0 %v1559
    %1598 = vmatprep.subr.mxu0 0.0
    %1599 = vmatpush1.msra.mxu0 %v1560
    %1600 = vmatprep.subr.mxu0 0.0
    %1601 = vmatpush1.msra.mxu0 0.0
    %1602 = vmatprep.subr.mxu0 0.0
    %1603 = vmatpush1.msra.mxu0 0.0
    %1604 = vmatprep.subr.mxu0 0.0
    %1605 = vmatpush1.msra.mxu0 0.0
    %1606 = vmatprep.subr.mxu0 0.0
    %1607 = vmatpush1.msra.mxu0 0.0
    %1608 = vmatprep.subr.mxu0 0.0
    %1609 = vmatpush1.msra.mxu0 0.0
    %1610 = vmatprep.subr.mxu0 0.0
    %1611 = vmatpush1.msra.mxu0 0.0
    %1612 = vmatprep.subr.mxu0 0.0
    %1613 = vmatpush1.msra.mxu0 0.0
    %1614 = vmatprep.subr.mxu0 0.0
    %1615 = vmatpush1.msra.mxu0 0.0
    %1616 = vmatprep.subr.mxu0 0.0
    %1617 = vmatpush1.msra.mxu0 0.0
    %1618 = vmatprep.subr.mxu0 0.0
    %1619 = vmatpush1.msra.mxu0 0.0
    %1620 = vmatprep.subr.mxu0 0.0
    %1621 = vmatpush1.msra.mxu0 0.0
    %1622 = vmatprep.subr.mxu0 0.0
    %1623 = vmatpush1.msra.mxu0 0.0
    %1624 = vmatprep.subr.mxu0 0.0
    %1625 = vmatpush1.msra.mxu0 0.0
    %1626 = vmatprep.subr.mxu0 0.0
    %1627 = vmatpush1.msra.mxu0 0.0
    %1628 = vmatprep.subr.mxu0 0.0
    %1629 = vmatpush1.msra.mxu0 0.0
    %1630 = vmatprep.subr.mxu0 0.0
    %1631 = vmatpush1.msra.mxu0 0.0
    %1632 = vmatprep.mubr.f32.mxu0 0.0
    %1633 = vmatmul.mubr.f32.gmra.mrb[0].mxu0 %v1544
    %v1634 = vpop.f32.mrb[0].mxu0
    %v1635 = vadd.f32 %v1566, %v1634
    %v1636 = vpop.f32.mrb[0].mxu0
    %1637 = vdwg.mxu0
    %1638 = vst [vmem:[#allocation11] sm:$0xff] %v1635
    // Predicated region
    $region50: #{tpu_custom_call.1} parent=1 // pred_check
      _
    $region51: #{tpu_custom_call.1} parent=1 // pred_check_branch
      %1640 = sbr.rel (0) target = $region53
    $region52: #{tpu_custom_call.1} parent=1 // pred_region
      %s1642 = ssub.s32 128, 128
      %1643 = vsyncadd [#allocation4], %s1642
      %s1645 = sshll.u32 [#allocation11], 4
      %s1646 = int_to_ptr.vmem [resolvable:$true] %s1645
      %1648 = dma.vmem_to_hbm [thread:$0]  %s1646, 128, %s7, [#allocation4]
    $region53: #{tpu_custom_call.1} parent=1 // pred_fallthru
      _
    // Predicated region
    $region54: #{tpu_custom_call.1} parent=1 // pred_check
      _
    $region55: #{tpu_custom_call.1} parent=1 // pred_check_branch
      %1650 = sbr.rel (0) target = $region57
    $region56: #{tpu_custom_call.1} parent=1 // pred_region
      %1651 = dma.done [#allocation4], 128
    $region57: #{tpu_custom_call.1} parent=1 // pred_fallthru
      _
    %1652 = vsyncpa [#allocation3], 1
    %1653 = vsyncpa [#allocation6], 1
    %1654 = vsyncpa [#allocation9], 1
    %1655 = vsyncpa [#allocation4], 1

</llo_original>
